<compile_context>
chip_gen: v7x
topology: tpu7x:2x2x1
jax: 0.10.0
libtpu: 0.0.40
codegen_flags: <defaults>
</compile_context>

<pallas_src>
from functools import partial

import numpy as np
import jax
import jax.numpy as jnp
from jax.experimental import pallas as pl
from jax.experimental.pallas import tpu as pltpu


def _logits_softmax_kernel(masks_ref, w_ref, b_ref, p_ref):
    """p[i-tile] = softmax(masks[i-tile] @ W' + b), logits accumulated over D-blocks.

    Grid = (N_tiles, D_blocks); p_ref is resident across the D (reduction) axis.
    """
    k = pl.program_id(1)

    @pl.when(k == 0)
    def _():
        p_ref[...] = jnp.broadcast_to(b_ref[...], p_ref.shape)

    # bf16 tiles feed the MXU directly; f32 accumulation in the resident output.
    p_ref[...] += jnp.dot(masks_ref[...], w_ref[...],
                          preferred_element_type=jnp.float32)

    @pl.when(k == pl.num_programs(1) - 1)
    def _():
        logits = p_ref[...]
        mx = jnp.max(logits, axis=1, keepdims=True)
        e = jnp.exp(logits - mx)
        p_ref[...] = e / jnp.sum(e, axis=1, keepdims=True)


def _saliency_kernel(pT_ref, masks_ref, sal_ref, *, scale):
    """sal[:, d-block] = scale * sum over N-tiles of p^T-tile @ masks-tile."""
    i = pl.program_id(1)

    @pl.when(i == 0)
    def _():
        sal_ref[...] = jnp.zeros_like(sal_ref)

    # Canonical (CL, tn) x (tn, td) bf16 MXU feed; no per-step transpose.
    sal_ref[...] += jnp.dot(pT_ref[...], masks_ref[...],
                            preferred_element_type=jnp.float32)

    @pl.when(i == pl.num_programs(1) - 1)
    def _():
        sal_ref[...] = sal_ref[...] * scale        # fold 1/(N*p1) once, in f32


def _pick_tile(dim, cap, multiple, prefer_at_most=None):
    """Largest divisor of `dim` that is a multiple of `multiple` and <= cap.

    If `prefer_at_most` is given, first try to find one <= prefer_at_most
    (used to guarantee >=2 blocks on a parallel axis). Falls back to `dim`.
    """
    def search(upper):
        d = min(upper, dim)
        d -= d % multiple
        while d >= multiple:
            if dim % d == 0:
                return d
            d -= multiple
        return None

    if prefer_at_most is not None:
        t = search(min(cap, prefer_at_most))
        if t is not None:
            return t
    t = search(cap)
    return t if t is not None else dim


def _vmem_capacity_bytes():
    try:
        return int(pltpu.get_tpu_info().vmem_capacity_bytes)
    except Exception:
        return 64 * 2 ** 20       # conservative: v7x per-TC VMEM


def rise_forward(x, masks, w_cls, b_cls, p1, *, tn=None, td=None):
    """x: (1, L, H, W), masks: (N, L, H, W). Returns (sal (CL, L, H, W), p (N, CL))."""
    N = masks.shape[0]
    _, L, H, W = x.shape
    D = L * H * W
    CL = w_cls.shape[1]

    # --- tile choices --------------------------------------------------------
    # masks tiles target multi-MiB blocks; tn <= N/2 when possible so kernel 1's
    # parallel axis has >=2 blocks (v7x megacore). Multiples of 128 keep every
    # BlockSpec dim either 128-aligned or equal to the full array dim.
    if td is None:
        td = _pick_tile(D, cap=4096, multiple=128)
    if tn is None:
        tn = _pick_tile(N, cap=512, multiple=128,
                        prefer_at_most=max(N // 2, 128))
    assert D % td == 0 and N % tn == 0
    nk = D // td          # D-blocks (reduction axis of kernel 1)
    nn = N // tn          # N-tiles  (parallel in kernel 1, reduction in kernel 2)
    nd = D // td          # D-blocks (parallel axis of kernel 2)

    # --- host-side prep (tiny) ----------------------------------------------
    # Fold x into the classifier weights: (masks * x) @ W == masks @ (x ⊙ W).
    masks_bf = masks.reshape(N, D).astype(jnp.bfloat16)
    w_eff_bf = (x.reshape(D, 1).astype(jnp.float32)
                * w_cls.astype(jnp.float32)).astype(jnp.bfloat16)   # (D, CL)
    b2 = b_cls.reshape(1, CL).astype(jnp.float32)
    scale = 1.0 / (float(N) * float(p1))

    # --- VMEM budget, derived from actual chip capacity ----------------------
    bf16, f32 = 2, 4

    def _footprint(rows, cols, bytes_per):           # crude lane-padding model
        return rows * max(cols, 128) * bytes_per

    k1_step = (2 * _footprint(tn, td, bf16)          # double-buffered masks
               + 2 * _footprint(td, CL, bf16)        # double-buffered W'
               + 2 * _footprint(1, CL, f32)          # bias
               + 2 * _footprint(tn, CL, f32))        # resident p tile
    k2_step = (2 * _footprint(tn, td, bf16)
               + 2 * _footprint(CL, tn, bf16)
               + 2 * _footprint(CL, td, f32))
    need = max(k1_step, k2_step)
    cap = _vmem_capacity_bytes()
    vmem_limit = int(min(max(32 * 2 ** 20, 2 * need), (cap * 3) // 4))
    vmem_limit = max(vmem_limit, need + (4 * 2 ** 20))

    # --- kernel 1: masked stack -> linear head -> softmax probabilities ------
    p = pl.pallas_call(
        _logits_softmax_kernel,
        out_shape=jax.ShapeDtypeStruct((N, CL), jnp.float32),
        grid_spec=pltpu.PrefetchScalarGridSpec(
            num_scalar_prefetch=0,
            grid=(nn, nk),
            in_specs=[
                pl.BlockSpec((tn, td), lambda i, k: (i, k)),   # masks tile
                pl.BlockSpec((td, CL), lambda i, k: (k, 0)),   # W' block
                pl.BlockSpec((1, CL), lambda i, k: (0, 0)),    # bias
            ],
            out_specs=pl.BlockSpec((tn, CL), lambda i, k: (i, 0)),
        ),
        compiler_params=pltpu.CompilerParams(
            dimension_semantics=("parallel", "arbitrary"),
            vmem_limit_bytes=vmem_limit),
    )(masks_bf, w_eff_bf, b2)

    # Tiny (N, CL) transpose + bf16 cast in the wrapper -> lane-dense LHS for
    # kernel 2, no per-step XLU transpose inside the kernel.
    pT_bf = jnp.transpose(p).astype(jnp.bfloat16)               # (CL, N)

    # --- kernel 2: sal = scale * p^T @ masks, tiled over D (parallel) and N ---
    sal_flat = pl.pallas_call(
        partial(_saliency_kernel, scale=scale),
        out_shape=jax.ShapeDtypeStruct((CL, D), jnp.float32),
        grid_spec=pltpu.PrefetchScalarGridSpec(
            num_scalar_prefetch=0,
            grid=(nd, nn),
            in_specs=[
                pl.BlockSpec((CL, tn), lambda j, i: (0, i)),   # p^T tile
                pl.BlockSpec((tn, td), lambda j, i: (i, j)),   # masks tile
            ],
            out_specs=pl.BlockSpec((CL, td), lambda j, i: (0, j)),
        ),
        compiler_params=pltpu.CompilerParams(
            dimension_semantics=("parallel", "arbitrary"),
            vmem_limit_bytes=vmem_limit),
    )(pT_bf, masks_bf)

    return sal_flat.reshape(CL, L, H, W), p


if __name__ == "__main__":
    # Small shapes consistent with the module's forward: x is (1, L, H, W).
    N, CL = 512, 16
    L, H, W = 4, 16, 16
    p1 = 0.5
    D = L * H * W

    key = jax.random.PRNGKey(0)
    k_x, k_m, k_w, k_b = jax.random.split(key, 4)

    x = jax.random.uniform(k_x, (1, L, H, W), dtype=jnp.float32)
    # RISE masks: (N, L, H, W) binary occlusion masks with keep-prob p1.
    masks = (jax.random.uniform(k_m, (N, L, H, W)) < p1).astype(jnp.float32)
    # Deterministic synthetic linear classifier parameters.
    w_cls = jax.random.normal(k_w, (D, CL), dtype=jnp.float32) * 0.02
    b_cls = jax.random.normal(k_b, (CL,), dtype=jnp.float32) * 0.01

    sal, p = rise_forward(x, masks, w_cls, b_cls, p1)
    jax.block_until_ready(sal)

    # Pure-JAX f32 reference (original, un-folded formulation). Tolerances
    # reflect bf16 streaming of masks / W' / p^T (f32 accumulation throughout).
    masks_f = masks.reshape(N, D)
    x_f = x.reshape(1, D)
    logits_ref = (masks_f * x_f) @ w_cls + b_cls
    p_ref = jax.nn.softmax(logits_ref, axis=1)
    sal_ref = ((p_ref.T @ masks_f) / N / p1).reshape(CL, L, H, W)

    assert sal.shape == (CL, L, H, W)
    np.testing.assert_allclose(np.asarray(p), np.asarray(p_ref),
                               rtol=1e-2, atol=1e-4)
    np.testing.assert_allclose(np.asarray(sal), np.asarray(sal_ref),
                               rtol=1e-2, atol=1e-4)

    print("KERNEL_OK")
</pallas_src>

<mosaic_0001>
module attributes {stable_mosaic.version = 11 : i64} {
  func.func @_logits_softmax_kernel(%arg0: i32, %arg1: i32, %arg2: memref<256x1024xbf16, #tpu.memory_space<vmem>>, %arg3: memref<1024x16xbf16, #tpu.memory_space<vmem>>, %arg4: memref<1x16xf32, #tpu.memory_space<vmem>>, %arg5: memref<256x16xf32, #tpu.memory_space<vmem>>) attributes {dimension_semantics = [#tpu.dimension_semantics<parallel>, #tpu.dimension_semantics<arbitrary>], iteration_bounds = array<i64: 2, 1>, scalar_prefetch = 0 : i64, scratch_operands = 0 : i64, tpu.core_type = #tpu.core_type<tc>, window_params = [{transform_indices = @transform_0, window_bounds = array<i64: 256, 1024>}, {transform_indices = @transform_1, window_bounds = array<i64: 1024, 16>}, {pipeline_mode = #tpu.pipeline_mode<synchronous>, transform_indices = @transform_2, window_bounds = array<i64: 1, 16>}, {transform_indices = @transform_3, window_bounds = array<i64: 256, 16>}]} {
    %c0_i32 = arith.constant 0 : i32
    %0 = arith.cmpi eq, %arg1, %c0_i32 : i32
    %1 = arith.extui %0 : i1 to i32
    %c0_i32_0 = arith.constant 0 : i32
    %2 = arith.cmpi ne, %1, %c0_i32_0 : i32
    scf.if %2 {
      %c0_10 = arith.constant 0 : index
      %c0_11 = arith.constant 0 : index
      %12 = vector.load %arg4[%c0_10, %c0_11] : memref<1x16xf32, #tpu.memory_space<vmem>>, vector<1x16xf32>
      %13 = vector.shape_cast %12 : vector<1x16xf32> to vector<1x16xf32>
      %14 = vector.broadcast %13 : vector<1x16xf32> to vector<256x16xf32>
      %c0_12 = arith.constant 0 : index
      %c0_13 = arith.constant 0 : index
      %15 = vector.load %arg5[%c0_12, %c0_13] : memref<256x16xf32, #tpu.memory_space<vmem>>, vector<256x16xf32>
      tpu.vector_store %arg5[%c0_12, %c0_13], %14 {strides = array<i32>} : memref<256x16xf32, #tpu.memory_space<vmem>>, vector<256x16xf32>,
    } else {
    }
    %c0 = arith.constant 0 : index
    %c0_1 = arith.constant 0 : index
    %3 = vector.load %arg5[%c0, %c0_1] : memref<256x16xf32, #tpu.memory_space<vmem>>, vector<256x16xf32>
    %c0_2 = arith.constant 0 : index
    %c0_3 = arith.constant 0 : index
    %4 = vector.load %arg2[%c0_2, %c0_3] : memref<256x1024xbf16, #tpu.memory_space<vmem>>, vector<256x1024xbf16>
    %c0_4 = arith.constant 0 : index
    %c0_5 = arith.constant 0 : index
    %5 = vector.load %arg3[%c0_4, %c0_5] : memref<1024x16xbf16, #tpu.memory_space<vmem>>, vector<1024x16xbf16>
    %cst = arith.constant dense<0.000000e+00> : vector<256x16xf32>
    %6 = tpu.matmul %4, %5, %cst {dimension_numbers = #tpu.dot_dimension_numbers<[1], [0], [0], [1], [0, 0, 1, 1], [], []>} : vector<256x1024xbf16>, vector<1024x16xbf16>, vector<256x16xf32> -> vector<256x16xf32>
    %7 = arith.addf %3, %6 : vector<256x16xf32>
    %c0_6 = arith.constant 0 : index
    %c0_7 = arith.constant 0 : index
    %8 = vector.load %arg5[%c0_6, %c0_7] : memref<256x16xf32, #tpu.memory_space<vmem>>, vector<256x16xf32>
    tpu.vector_store %arg5[%c0_6, %c0_7], %7 {strides = array<i32>} : memref<256x16xf32, #tpu.memory_space<vmem>>, vector<256x16xf32>,
    %c0_i32_8 = arith.constant 0 : i32
    %9 = arith.cmpi eq, %arg1, %c0_i32_8 : i32
    %10 = arith.extui %9 : i1 to i32
    %c0_i32_9 = arith.constant 0 : i32
    %11 = arith.cmpi ne, %10, %c0_i32_9 : i32
    scf.if %11 {
      %c0_10 = arith.constant 0 : index
      %c0_11 = arith.constant 0 : index
      %12 = vector.load %arg5[%c0_10, %c0_11] : memref<256x16xf32, #tpu.memory_space<vmem>>, vector<256x16xf32>
      %cst_12 = arith.constant dense<0xFF800000> : vector<256xf32>
      %13 = vector.multi_reduction <maximumf>, %12, %cst_12 [1] : vector<256x16xf32> to vector<256xf32>
      %14 = vector.shape_cast %13 : vector<256xf32> to vector<256x1xf32>
      %15 = vector.broadcast %14 : vector<256x1xf32> to vector<256x16xf32>
      %16 = arith.subf %12, %15 : vector<256x16xf32>
      %17 = math.exp %16 : vector<256x16xf32>
      %cst_13 = arith.constant dense<0.000000e+00> : vector<256xf32>
      %18 = vector.multi_reduction <add>, %17, %cst_13 [1] : vector<256x16xf32> to vector<256xf32>
      %19 = vector.shape_cast %18 : vector<256xf32> to vector<256x1xf32>
      %20 = vector.broadcast %19 : vector<256x1xf32> to vector<256x16xf32>
      %21 = arith.divf %17, %20 : vector<256x16xf32>
      %c0_14 = arith.constant 0 : index
      %c0_15 = arith.constant 0 : index
      %22 = vector.load %arg5[%c0_14, %c0_15] : memref<256x16xf32, #tpu.memory_space<vmem>>, vector<256x16xf32>
      tpu.vector_store %arg5[%c0_14, %c0_15], %21 {strides = array<i32>} : memref<256x16xf32, #tpu.memory_space<vmem>>, vector<256x16xf32>,
    } else {
    }
    return
  }
  func.func @transform_0(%arg0: i32, %arg1: i32) -> (i32, i32) {
    %c0_i32 = arith.constant 0 : i32
    return %arg0, %arg1 : i32, i32
  }
  func.func @transform_1(%arg0: i32, %arg1: i32) -> (i32, i32) {
    %c0_i32 = arith.constant 0 : i32
    %c0_i32_0 = arith.constant 0 : i32
    return %arg1, %c0_i32 : i32, i32
  }
  func.func @transform_2(%arg0: i32, %arg1: i32) -> (i32, i32) {
    %c0_i32 = arith.constant 0 : i32
    %c0_i32_0 = arith.constant 0 : i32
    %c0_i32_1 = arith.constant 0 : i32
    return %c0_i32, %c0_i32_0 : i32, i32
  }
  func.func @transform_3(%arg0: i32, %arg1: i32) -> (i32, i32) {
    %c0_i32 = arith.constant 0 : i32
    %c0_i32_0 = arith.constant 0 : i32
    return %arg0, %c0_i32 : i32, i32
  }
}

</mosaic_0001>

<llo_original>
// kernel: tpu_custom_call.1
$region0: #{tpu_custom_call.1}
  #allocation0 [shape = 'u32[]', space=smem, size = 0x4, offset = 0x4, fixed_abs, tag = 'smem constant byte address 0x4 - core index']
  #allocation1 [shape = 'u32[144,128]{1,0:T(1,128)}', space=vmem, size = 0x12000, scoped, tag = 'internal scratch']
  %s0 = inlined_call_operand.hbm [shape: bf16[512,1024], index: 0, kind: input, shape index: {}]
  %s1 = inlined_call_operand.vmem [shape: bf16[1024,16], index: 1, kind: input, shape index: {}]
  %s2 = inlined_call_operand.vmem [shape: f32[1,16], index: 2, kind: input, shape index: {}]
  %s3 = inlined_call_operand.vmem [shape: f32[512,16], index: 3, kind: output, shape index: {}]
  %s4 = sld [smem:[#allocation0]]
  $region57: #{tpu_custom_call.1} parent=0
    _
  %s6 = ssub.s32 1, %s4
  %s7 = scalar_select 0, %s6, %s4
  $region1: #{tpu_custom_call.1} parent=0
    #allocation2 [shape = 'u8[1048576]{0}', space=vmem, size = 0x100000, scoped, tag = 'input window, operand 0']
    #allocation3 [shape = 's32[2]{0}', space=sflag, size = 0x8, scoped, tag = 'scoped memory for tpu_custom_call.1']
    %8 = vsyncpa [#allocation3], 0
    %s9 = scalar_lea.sflag [#allocation3], 1
    %10 = vsyncpa %s9, 0
    loop: start=0, step=1, limit=4
    $region2: #{tpu_custom_call.1} parent=1 // loop_pre_header
      _
    $region3: #{tpu_custom_call.1} parent=1 // loop_header
      %s12 = sphi 0, %s16
      %p13 = scmp.ge.s32.totalorder %s12, 4
      %s19 = sphi 0, %s31
      %s20 = sphi 0, %s27
      %s21 = sphi 0, %s19
      %s22 = sphi 0, %s20
      %s23 = sphi 0, %s21
      %s24 = sphi 0, %s22
      %s36 = sphi 0, %s38
      %s39 = sphi 0, %s36
      %s40 = sphi 0, %s39
      %s56 = sphi 0, %s40
      %s62 = sphi 0, %s64
      %s65 = sphi 0, %s62
      %s66 = sphi 0, %s65
      %s82 = sphi 0, %s66
      %s86 = sphi 0, %s86
      %s88 = sphi 0, %s86
      %s89 = sphi 0, %s88
      %s103 = sphi 0, %s89
      %s109 = sphi 0, %s111
      %s112 = sphi 0, %s109
      %s113 = sphi 0, %s112
      %s129 = sphi 0, %s113
    $region4: #{tpu_custom_call.1} parent=1 // loop_header_branch
      %15 = sbr.rel (%p13) target = $region8
    $region5: #{tpu_custom_call.1} parent=1 // loop_body
      %s17 = ssub.s32 %s12, 1
      %s18 = ssub.s32 %s12, 2
      %s25 = sadd.s32 1, %s20
      %p26 = scmp.ge.s32.totalorder %s25, 1
      %s27 = scalar_select %p26, 0, %s25
      %s28 = sadd.s32 1, %s19
      %s29 = scalar_select %p26, %s28, %s19
      %p30 = scmp.ge.s32.totalorder %s29, 2
      %s31 = scalar_select %p30, 0, %s29
      %s32 = ssub.s32 %s19, %s31
      %s33 = ssub.s32 %s20, %s27
      %s34 = sor.u32 %s32, %s33
      %p35 = scmp.eq.s32.totalorder %s34, 0
      %s37 = sadd.s32 %s36, 1
      %s38 = scalar_select %p35, %s36, %s37
      %p41 = pneg %p35
      %p42 = scmp.eq.s32.totalorder %s12, 1
      %p43 = por %p41, %p42
      %p44 = scmp.ne.s32.totalorder %s36, %s39
      %p45 = scmp.eq.s32.totalorder %s12, 0
      %p46 = por %p44, %p45
      %p47 = scmp.ne.s32.totalorder %s36, %s39
      %p48 = scmp.eq.s32.totalorder %s17, 1
      %p49 = por %p47, %p48
      %p50 = scmp.ne.s32.totalorder %s39, %s40
      %p51 = scmp.eq.s32.totalorder %s17, 0
      %p52 = por %p50, %p51
      %p53 = scmp.ne.s32.totalorder %s39, %s40
      %p54 = scmp.eq.s32.totalorder %s18, 1
      %p55 = por %p53, %p54
      %p57 = scmp.ne.s32.totalorder %s40, %s56
      %p58 = scmp.eq.s32.totalorder %s18, 0
      %p59 = por %p57, %p58
      %s60 = ssub.s32 %s20, %s27
      %p61 = scmp.eq.s32.totalorder %s60, 0
      %s63 = sadd.s32 %s62, 1
      %s64 = scalar_select %p61, %s62, %s63
      %p67 = pneg %p61
      %p68 = scmp.eq.s32.totalorder %s12, 1
      %p69 = por %p67, %p68
      %p70 = scmp.ne.s32.totalorder %s62, %s65
      %p71 = scmp.eq.s32.totalorder %s12, 0
      %p72 = por %p70, %p71
      %p73 = scmp.ne.s32.totalorder %s62, %s65
      %p74 = scmp.eq.s32.totalorder %s17, 1
      %p75 = por %p73, %p74
      %p76 = scmp.ne.s32.totalorder %s65, %s66
      %p77 = scmp.eq.s32.totalorder %s17, 0
      %p78 = por %p76, %p77
      %p79 = scmp.ne.s32.totalorder %s65, %s66
      %p80 = scmp.eq.s32.totalorder %s18, 1
      %p81 = por %p79, %p80
      %p83 = scmp.ne.s32.totalorder %s66, %s82
      %p84 = scmp.eq.s32.totalorder %s18, 0
      %p85 = por %p83, %p84
      %s87 = sadd.s32 %s86, 1
      %p90 = scmp.eq.s32.totalorder %s12, 1
      %p91 = scmp.ne.s32.totalorder %s86, %s88
      %p92 = scmp.eq.s32.totalorder %s12, 0
      %p93 = por %p91, %p92
      %p94 = scmp.ne.s32.totalorder %s86, %s88
      %p95 = scmp.eq.s32.totalorder %s17, 1
      %p96 = por %p94, %p95
      %p97 = scmp.ne.s32.totalorder %s88, %s89
      %p98 = scmp.eq.s32.totalorder %s17, 0
      %p99 = por %p97, %p98
      %p100 = scmp.ne.s32.totalorder %s88, %s89
      %p101 = scmp.eq.s32.totalorder %s18, 1
      %p102 = por %p100, %p101
      %p104 = scmp.ne.s32.totalorder %s89, %s103
      %p105 = scmp.eq.s32.totalorder %s18, 0
      %p106 = por %p104, %p105
      %s107 = ssub.s32 %s19, %s31
      %p108 = scmp.eq.s32.totalorder %s107, 0
      %s110 = sadd.s32 %s109, 1
      %s111 = scalar_select %p108, %s109, %s110
      %p114 = pneg %p108
      %p115 = scmp.eq.s32.totalorder %s12, 1
      %p116 = por %p114, %p115
      %p117 = scmp.ne.s32.totalorder %s109, %s112
      %p118 = scmp.eq.s32.totalorder %s12, 0
      %p119 = por %p117, %p118
      %p120 = scmp.ne.s32.totalorder %s109, %s112
      %p121 = scmp.eq.s32.totalorder %s17, 1
      %p122 = por %p120, %p121
      %p123 = scmp.ne.s32.totalorder %s112, %s113
      %p124 = scmp.eq.s32.totalorder %s17, 0
      %p125 = por %p123, %p124
      %p126 = scmp.ne.s32.totalorder %s112, %s113
      %p127 = scmp.eq.s32.totalorder %s18, 1
      %p128 = por %p126, %p127
      %p130 = scmp.ne.s32.totalorder %s113, %s129
      %p131 = scmp.eq.s32.totalorder %s18, 0
      %p132 = por %p130, %p131
      %p133 = scmp.le.s32.totalorder 1, %s12
      %p134 = scmp.lt.s32.totalorder %s12, 3
      %p135 = pnand %p133, %p134
      %p136 = pneg %p135
      // Predicated region
      $region9: #{tpu_custom_call.1} parent=5 // pred_check
        _
      $region10: #{tpu_custom_call.1} parent=5 // pred_check_branch
        %138 = sbr.rel (%p135) target = $region12
      $region11: #{tpu_custom_call.1} parent=5 // pred_region
        %s139 = ssub.s32 %s12, 1
        // Predicated region
        $region13: #{tpu_custom_call.1} parent=11 // pred_check
          %p140 = pneg %p78
        $region14: #{tpu_custom_call.1} parent=11 // pred_check_branch
          %142 = sbr.rel (%p140) target = $region16
        $region15: #{tpu_custom_call.1} parent=11 // pred_region
          %s143 = smul.u32 128, %s22
          %p144 = scmp.lt.s32.totalorder %s143, 127
          %s145 = scalar_select %p144, %s143, 127
          %s146 = smul.addr %s145, 4
          %s147 = scalar_lea.vmem %s1, %s146
          %s148 = smul.u32 128, %s22
        $region16: #{tpu_custom_call.1} parent=11 // pred_fallthru
          _
        // Predicated region
        $region17: #{tpu_custom_call.1} parent=11 // pred_check
          %p149 = pneg %p99
        $region18: #{tpu_custom_call.1} parent=11 // pred_check_branch
          %151 = sbr.rel (%p149) target = $region20
        $region19: #{tpu_custom_call.1} parent=11 // pred_region
          _
        $region20: #{tpu_custom_call.1} parent=11 // pred_fallthru
          _
      $region12: #{tpu_custom_call.1} parent=5 // pred_fallthru
        _
      %p152 = scmp.lt.s32.totalorder %s12, 2
      // Predicated region
      $region21: #{tpu_custom_call.1} parent=5 // pred_check
        %p153 = pneg %p152
      $region22: #{tpu_custom_call.1} parent=5 // pred_check_branch
        %155 = sbr.rel (%p153) target = $region24
      $region23: #{tpu_custom_call.1} parent=5 // pred_region
        // Predicated region
        $region25: #{tpu_custom_call.1} parent=23 // pred_check
          %p156 = pneg %p46
        $region26: #{tpu_custom_call.1} parent=23 // pred_check_branch
          %158 = sbr.rel (%p156) target = $region28
        $region27: #{tpu_custom_call.1} parent=23 // pred_region
          %s159 = sand.u32 %s36, 1
          %s160 = scalar_lea.sflag [#allocation3], %s159
          %s161 = sand.u32 %s36, 1
          %s162 = smul.addr %s161, 1024
          %s163 = scalar_lea.vmem [#allocation2], %s162
          %s164 = smul.u32 32, %s19
          %s165 = smul.u32 8, %s20
          %s167 = ssub.s32 16384, 16384
          %168 = vsyncadd %s160, %s167
          %s169 = smul.addr %s164, 8
          %s170 = sadd.s32 %s165, %s169
          %s171 = smul.addr %s170, 64
          %s172 = scalar_lea.hbm %s0, %s171
          %s173 = sshll.u32 %s163, 4
          %s174 = int_to_ptr.vmem [resolvable:$true] %s173
          %179 = dma.hbm_to_vmem [thread:$0]  %s172, 16384, %s174, %s160, 512, 512, 32
        $region28: #{tpu_custom_call.1} parent=23 // pred_fallthru
          _
      $region24: #{tpu_custom_call.1} parent=5 // pred_fallthru
        _
      %p180 = scmp.le.s32.totalorder 1, %s12
      %p181 = scmp.lt.s32.totalorder %s12, 3
      %p182 = pnand %p180, %p181
      %p183 = pneg %p182
      // Predicated region
      $region29: #{tpu_custom_call.1} parent=5 // pred_check
        _
      $region30: #{tpu_custom_call.1} parent=5 // pred_check_branch
        %185 = sbr.rel (%p182) target = $region32
      $region31: #{tpu_custom_call.1} parent=5 // pred_region
        %s186 = ssub.s32 %s12, 1
        %s187 = sand.u32 %s39, 1
        %s188 = scalar_lea.sflag [#allocation3], %s187
        %s189 = sand.u32 %s39, 1
        %s190 = smul.addr %s189, 1024
        %s191 = scalar_lea.vmem [#allocation2], %s190
        // Predicated region
        $region33: #{tpu_custom_call.1} parent=31 // pred_check
          %p192 = pneg %p52
        $region34: #{tpu_custom_call.1} parent=31 // pred_check_branch
          %194 = sbr.rel (%p192) target = $region36
        $region35: #{tpu_custom_call.1} parent=31 // pred_region
          %195 = dma.done %s188, 16384
        $region36: #{tpu_custom_call.1} parent=31 // pred_fallthru
          _
        %s196 = sand.u32 %s39, 1
        %s197 = scalar_lea.sflag [#allocation3], %s196
        %s198 = sand.u32 %s39, 1
        %s199 = smul.addr %s198, 1024
        %s200 = scalar_lea.vmem [#allocation2], %s199
        %p201 = pneg %p52
        %p202 = pneg %p49
        %s203 = smul.u32 128, %s22
        %p204 = scmp.lt.s32.totalorder %s203, 127
        %s205 = scalar_select %p204, %s203, 127
        %s206 = smul.addr %s205, 4
        %s207 = scalar_lea.vmem %s1, %s206
        %p208 = pneg %p78
        %p209 = pneg %p75
        %p210 = pneg %p99
        %p211 = pneg %p96
        %p212 = pneg %p125
        %p213 = pneg %p122
        %s214 = smul.u32 32, %s21
        %p215 = scmp.lt.s32.totalorder %s214, 63
        %s216 = scalar_select %p215, %s214, 63
        %s217 = smul.addr %s216, 8
        %s218 = scalar_lea.vmem %s3, %s217
        %s219 = smul.u32 32, %s21
        %s220 = smul.u32 8, %s22
        %s221 = smul.u32 128, %s22
        %p222 = scmp.lt.s32.totalorder %s221, 127
        %s223 = scalar_select %p222, %s221, 127
        %s224 = smul.addr %s223, 4
        %s225 = scalar_lea.vmem %s1, %s224
        %s226 = smul.u32 128, %s22
        %s227 = smul.u32 32, %s21
        %p228 = scmp.lt.s32.totalorder %s227, 63
        %s229 = scalar_select %p228, %s227, 63
        %s230 = smul.addr %s229, 8
        %s231 = scalar_lea.vmem %s3, %s230
        %s232 = smul.u32 32, %s21
        %p234 = scmp.eq.s32.totalorder %s22, 0
        // Predicated region
        $region37: #{tpu_custom_call.1} parent=31 // pred_check
          %p235 = pneg %p234
        $region38: #{tpu_custom_call.1} parent=31 // pred_check_branch
          %237 = sbr.rel (%p235) target = $region40
        $region39: #{tpu_custom_call.1} parent=31 // pred_region
          %v238 = vld [vmem:[%s2] sm:$0x1]
          %v240 = vlaneseq
          %v241 = vshrl.u32 %v240, 7
          %v242 = vsub.s32 0, %v241
          %v243 = vrot.slane %v238, %v242
          %vm245 = vcmask 130048
          %246 = vst.msk [vmem:[%s231] sm:$0xff] %vm245, %v243
          %247 = vst.msk [vmem:[%s231 + $0x8] sm:$0xff] %vm245, %v243
          %248 = vst.msk [vmem:[%s231 + $0x10] sm:$0xff] %vm245, %v243
          %249 = vst.msk [vmem:[%s231 + $0x18] sm:$0xff] %vm245, %v243
          %250 = vst.msk [vmem:[%s231 + $0x20] sm:$0xff] %vm245, %v243
          %251 = vst.msk [vmem:[%s231 + $0x28] sm:$0xff] %vm245, %v243
          %252 = vst.msk [vmem:[%s231 + $0x30] sm:$0xff] %vm245, %v243
          %253 = vst.msk [vmem:[%s231 + $0x38] sm:$0xff] %vm245, %v243
          %254 = vst.msk [vmem:[%s231 + $0x40] sm:$0xff] %vm245, %v243
          %255 = vst.msk [vmem:[%s231 + $0x48] sm:$0xff] %vm245, %v243
          %256 = vst.msk [vmem:[%s231 + $0x50] sm:$0xff] %vm245, %v243
          %257 = vst.msk [vmem:[%s231 + $0x58] sm:$0xff] %vm245, %v243
          %258 = vst.msk [vmem:[%s231 + $0x60] sm:$0xff] %vm245, %v243
          %259 = vst.msk [vmem:[%s231 + $0x68] sm:$0xff] %vm245, %v243
          %260 = vst.msk [vmem:[%s231 + $0x70] sm:$0xff] %vm245, %v243
          %261 = vst.msk [vmem:[%s231 + $0x78] sm:$0xff] %vm245, %v243
          %262 = vst.msk [vmem:[%s231 + $0x80] sm:$0xff] %vm245, %v243
          %263 = vst.msk [vmem:[%s231 + $0x88] sm:$0xff] %vm245, %v243
          %264 = vst.msk [vmem:[%s231 + $0x90] sm:$0xff] %vm245, %v243
          %265 = vst.msk [vmem:[%s231 + $0x98] sm:$0xff] %vm245, %v243
          %266 = vst.msk [vmem:[%s231 + $0xa0] sm:$0xff] %vm245, %v243
          %267 = vst.msk [vmem:[%s231 + $0xa8] sm:$0xff] %vm245, %v243
          %268 = vst.msk [vmem:[%s231 + $0xb0] sm:$0xff] %vm245, %v243
          %269 = vst.msk [vmem:[%s231 + $0xb8] sm:$0xff] %vm245, %v243
          %270 = vst.msk [vmem:[%s231 + $0xc0] sm:$0xff] %vm245, %v243
          %271 = vst.msk [vmem:[%s231 + $0xc8] sm:$0xff] %vm245, %v243
          %272 = vst.msk [vmem:[%s231 + $0xd0] sm:$0xff] %vm245, %v243
          %273 = vst.msk [vmem:[%s231 + $0xd8] sm:$0xff] %vm245, %v243
          %274 = vst.msk [vmem:[%s231 + $0xe0] sm:$0xff] %vm245, %v243
          %275 = vst.msk [vmem:[%s231 + $0xe8] sm:$0xff] %vm245, %v243
          %276 = vst.msk [vmem:[%s231 + $0xf0] sm:$0xff] %vm245, %v243
          %277 = vst.msk [vmem:[%s231 + $0xf8] sm:$0xff] %vm245, %v243
        $region40: #{tpu_custom_call.1} parent=31 // pred_fallthru
          _
        %v278 = vld [vmem:[%s231] sm:$0xff]
        %v279 = vld [vmem:[%s231 + $0x8] sm:$0xff]
        %v280 = vld [vmem:[%s231 + $0x10] sm:$0xff]
        %v281 = vld [vmem:[%s231 + $0x18] sm:$0xff]
        %v282 = vld [vmem:[%s231 + $0x20] sm:$0xff]
        %v283 = vld [vmem:[%s231 + $0x28] sm:$0xff]
        %v284 = vld [vmem:[%s231 + $0x30] sm:$0xff]
        %v285 = vld [vmem:[%s231 + $0x38] sm:$0xff]
        %v286 = vld [vmem:[%s231 + $0x40] sm:$0xff]
        %v287 = vld [vmem:[%s231 + $0x48] sm:$0xff]
        %v288 = vld [vmem:[%s231 + $0x50] sm:$0xff]
        %v289 = vld [vmem:[%s231 + $0x58] sm:$0xff]
        %v290 = vld [vmem:[%s231 + $0x60] sm:$0xff]
        %v291 = vld [vmem:[%s231 + $0x68] sm:$0xff]
        %v292 = vld [vmem:[%s231 + $0x70] sm:$0xff]
        %v293 = vld [vmem:[%s231 + $0x78] sm:$0xff]
        %v294 = vld [vmem:[%s231 + $0x80] sm:$0xff]
        %v295 = vld [vmem:[%s231 + $0x88] sm:$0xff]
        %v296 = vld [vmem:[%s231 + $0x90] sm:$0xff]
        %v297 = vld [vmem:[%s231 + $0x98] sm:$0xff]
        %v298 = vld [vmem:[%s231 + $0xa0] sm:$0xff]
        %v299 = vld [vmem:[%s231 + $0xa8] sm:$0xff]
        %v300 = vld [vmem:[%s231 + $0xb0] sm:$0xff]
        %v301 = vld [vmem:[%s231 + $0xb8] sm:$0xff]
        %v302 = vld [vmem:[%s231 + $0xc0] sm:$0xff]
        %v303 = vld [vmem:[%s231 + $0xc8] sm:$0xff]
        %v304 = vld [vmem:[%s231 + $0xd0] sm:$0xff]
        %v305 = vld [vmem:[%s231 + $0xd8] sm:$0xff]
        %v306 = vld [vmem:[%s231 + $0xe0] sm:$0xff]
        %v307 = vld [vmem:[%s231 + $0xe8] sm:$0xff]
        %v308 = vld [vmem:[%s231 + $0xf0] sm:$0xff]
        %v309 = vld [vmem:[%s231 + $0xf8] sm:$0xff]
        %v310 = vld [vmem:[%s191] sm:$0xff]
        %v311 = vld [vmem:[%s191 + $0x8] sm:$0xff]
        %v312 = vld [vmem:[%s191 + $0x10] sm:$0xff]
        %v313 = vld [vmem:[%s191 + $0x18] sm:$0xff]
        %v314 = vld [vmem:[%s191 + $0x20] sm:$0xff]
        %v315 = vld [vmem:[%s191 + $0x28] sm:$0xff]
        %v316 = vld [vmem:[%s191 + $0x30] sm:$0xff]
        %v317 = vld [vmem:[%s191 + $0x38] sm:$0xff]
        %v318 = vld [vmem:[%s191 + $0x40] sm:$0xff]
        %v319 = vld [vmem:[%s191 + $0x48] sm:$0xff]
        %v320 = vld [vmem:[%s191 + $0x50] sm:$0xff]
        %v321 = vld [vmem:[%s191 + $0x58] sm:$0xff]
        %v322 = vld [vmem:[%s191 + $0x60] sm:$0xff]
        %v323 = vld [vmem:[%s191 + $0x68] sm:$0xff]
        %v324 = vld [vmem:[%s191 + $0x70] sm:$0xff]
        %v325 = vld [vmem:[%s191 + $0x78] sm:$0xff]
        %v326 = vld [vmem:[%s191 + $0x80] sm:$0xff]
        %v327 = vld [vmem:[%s191 + $0x88] sm:$0xff]
        %v328 = vld [vmem:[%s191 + $0x90] sm:$0xff]
        %v329 = vld [vmem:[%s191 + $0x98] sm:$0xff]
        %v330 = vld [vmem:[%s191 + $0xa0] sm:$0xff]
        %v331 = vld [vmem:[%s191 + $0xa8] sm:$0xff]
        %v332 = vld [vmem:[%s191 + $0xb0] sm:$0xff]
        %v333 = vld [vmem:[%s191 + $0xb8] sm:$0xff]
        %v334 = vld [vmem:[%s191 + $0xc0] sm:$0xff]
        %v335 = vld [vmem:[%s191 + $0xc8] sm:$0xff]
        %v336 = vld [vmem:[%s191 + $0xd0] sm:$0xff]
        %v337 = vld [vmem:[%s191 + $0xd8] sm:$0xff]
        %v338 = vld [vmem:[%s191 + $0xe0] sm:$0xff]
        %v339 = vld [vmem:[%s191 + $0xe8] sm:$0xff]
        %v340 = vld [vmem:[%s191 + $0xf0] sm:$0xff]
        %v341 = vld [vmem:[%s191 + $0xf8] sm:$0xff]
        %v342 = vld [vmem:[%s191 + $0x100] sm:$0xff]
        %v343 = vld [vmem:[%s191 + $0x108] sm:$0xff]
        %v344 = vld [vmem:[%s191 + $0x110] sm:$0xff]
        %v345 = vld [vmem:[%s191 + $0x118] sm:$0xff]
        %v346 = vld [vmem:[%s191 + $0x120] sm:$0xff]
        %v347 = vld [vmem:[%s191 + $0x128] sm:$0xff]
        %v348 = vld [vmem:[%s191 + $0x130] sm:$0xff]
        %v349 = vld [vmem:[%s191 + $0x138] sm:$0xff]
        %v350 = vld [vmem:[%s191 + $0x140] sm:$0xff]
        %v351 = vld [vmem:[%s191 + $0x148] sm:$0xff]
        %v352 = vld [vmem:[%s191 + $0x150] sm:$0xff]
        %v353 = vld [vmem:[%s191 + $0x158] sm:$0xff]
        %v354 = vld [vmem:[%s191 + $0x160] sm:$0xff]
        %v355 = vld [vmem:[%s191 + $0x168] sm:$0xff]
        %v356 = vld [vmem:[%s191 + $0x170] sm:$0xff]
        %v357 = vld [vmem:[%s191 + $0x178] sm:$0xff]
        %v358 = vld [vmem:[%s191 + $0x180] sm:$0xff]
        %v359 = vld [vmem:[%s191 + $0x188] sm:$0xff]
        %v360 = vld [vmem:[%s191 + $0x190] sm:$0xff]
        %v361 = vld [vmem:[%s191 + $0x198] sm:$0xff]
        %v362 = vld [vmem:[%s191 + $0x1a0] sm:$0xff]
        %v363 = vld [vmem:[%s191 + $0x1a8] sm:$0xff]
        %v364 = vld [vmem:[%s191 + $0x1b0] sm:$0xff]
        %v365 = vld [vmem:[%s191 + $0x1b8] sm:$0xff]
        %v366 = vld [vmem:[%s191 + $0x1c0] sm:$0xff]
        %v367 = vld [vmem:[%s191 + $0x1c8] sm:$0xff]
        %v368 = vld [vmem:[%s191 + $0x1d0] sm:$0xff]
        %v369 = vld [vmem:[%s191 + $0x1d8] sm:$0xff]
        %v370 = vld [vmem:[%s191 + $0x1e0] sm:$0xff]
        %v371 = vld [vmem:[%s191 + $0x1e8] sm:$0xff]
        %v372 = vld [vmem:[%s191 + $0x1f0] sm:$0xff]
        %v373 = vld [vmem:[%s191 + $0x1f8] sm:$0xff]
        %v374 = vld [vmem:[%s191 + $0x200] sm:$0xff]
        %v375 = vld [vmem:[%s191 + $0x208] sm:$0xff]
        %v376 = vld [vmem:[%s191 + $0x210] sm:$0xff]
        %v377 = vld [vmem:[%s191 + $0x218] sm:$0xff]
        %v378 = vld [vmem:[%s191 + $0x220] sm:$0xff]
        %v379 = vld [vmem:[%s191 + $0x228] sm:$0xff]
        %v380 = vld [vmem:[%s191 + $0x230] sm:$0xff]
        %v381 = vld [vmem:[%s191 + $0x238] sm:$0xff]
        %v382 = vld [vmem:[%s191 + $0x240] sm:$0xff]
        %v383 = vld [vmem:[%s191 + $0x248] sm:$0xff]
        %v384 = vld [vmem:[%s191 + $0x250] sm:$0xff]
        %v385 = vld [vmem:[%s191 + $0x258] sm:$0xff]
        %v386 = vld [vmem:[%s191 + $0x260] sm:$0xff]
        %v387 = vld [vmem:[%s191 + $0x268] sm:$0xff]
        %v388 = vld [vmem:[%s191 + $0x270] sm:$0xff]
        %v389 = vld [vmem:[%s191 + $0x278] sm:$0xff]
        %v390 = vld [vmem:[%s191 + $0x280] sm:$0xff]
        %v391 = vld [vmem:[%s191 + $0x288] sm:$0xff]
        %v392 = vld [vmem:[%s191 + $0x290] sm:$0xff]
        %v393 = vld [vmem:[%s191 + $0x298] sm:$0xff]
        %v394 = vld [vmem:[%s191 + $0x2a0] sm:$0xff]
        %v395 = vld [vmem:[%s191 + $0x2a8] sm:$0xff]
        %v396 = vld [vmem:[%s191 + $0x2b0] sm:$0xff]
        %v397 = vld [vmem:[%s191 + $0x2b8] sm:$0xff]
        %v398 = vld [vmem:[%s191 + $0x2c0] sm:$0xff]
        %v399 = vld [vmem:[%s191 + $0x2c8] sm:$0xff]
        %v400 = vld [vmem:[%s191 + $0x2d0] sm:$0xff]
        %v401 = vld [vmem:[%s191 + $0x2d8] sm:$0xff]
        %v402 = vld [vmem:[%s191 + $0x2e0] sm:$0xff]
        %v403 = vld [vmem:[%s191 + $0x2e8] sm:$0xff]
        %v404 = vld [vmem:[%s191 + $0x2f0] sm:$0xff]
        %v405 = vld [vmem:[%s191 + $0x2f8] sm:$0xff]
        %v406 = vld [vmem:[%s191 + $0x300] sm:$0xff]
        %v407 = vld [vmem:[%s191 + $0x308] sm:$0xff]
        %v408 = vld [vmem:[%s191 + $0x310] sm:$0xff]
        %v409 = vld [vmem:[%s191 + $0x318] sm:$0xff]
        %v410 = vld [vmem:[%s191 + $0x320] sm:$0xff]
        %v411 = vld [vmem:[%s191 + $0x328] sm:$0xff]
        %v412 = vld [vmem:[%s191 + $0x330] sm:$0xff]
        %v413 = vld [vmem:[%s191 + $0x338] sm:$0xff]
        %v414 = vld [vmem:[%s191 + $0x340] sm:$0xff]
        %v415 = vld [vmem:[%s191 + $0x348] sm:$0xff]
        %v416 = vld [vmem:[%s191 + $0x350] sm:$0xff]
        %v417 = vld [vmem:[%s191 + $0x358] sm:$0xff]
        %v418 = vld [vmem:[%s191 + $0x360] sm:$0xff]
        %v419 = vld [vmem:[%s191 + $0x368] sm:$0xff]
        %v420 = vld [vmem:[%s191 + $0x370] sm:$0xff]
        %v421 = vld [vmem:[%s191 + $0x378] sm:$0xff]
        %v422 = vld [vmem:[%s191 + $0x380] sm:$0xff]
        %v423 = vld [vmem:[%s191 + $0x388] sm:$0xff]
        %v424 = vld [vmem:[%s191 + $0x390] sm:$0xff]
        %v425 = vld [vmem:[%s191 + $0x398] sm:$0xff]
        %v426 = vld [vmem:[%s191 + $0x3a0] sm:$0xff]
        %v427 = vld [vmem:[%s191 + $0x3a8] sm:$0xff]
        %v428 = vld [vmem:[%s191 + $0x3b0] sm:$0xff]
        %v429 = vld [vmem:[%s191 + $0x3b8] sm:$0xff]
        %v430 = vld [vmem:[%s191 + $0x3c0] sm:$0xff]
        %v431 = vld [vmem:[%s191 + $0x3c8] sm:$0xff]
        %v432 = vld [vmem:[%s191 + $0x3d0] sm:$0xff]
        %v433 = vld [vmem:[%s191 + $0x3d8] sm:$0xff]
        %v434 = vld [vmem:[%s191 + $0x3e0] sm:$0xff]
        %v435 = vld [vmem:[%s191 + $0x3e8] sm:$0xff]
        %v436 = vld [vmem:[%s191 + $0x3f0] sm:$0xff]
        %v437 = vld [vmem:[%s191 + $0x3f8] sm:$0xff]
        %v438 = vld [vmem:[%s225] sm:$0xf]
        %v439 = vld [vmem:[%s225 + $0x4] sm:$0xf]
        %v440 = vld [vmem:[%s225 + $0x8] sm:$0xf]
        %v441 = vld [vmem:[%s225 + $0xc] sm:$0xf]
        %v442 = vld [vmem:[%s225 + $0x10] sm:$0xf]
        %v443 = vld [vmem:[%s225 + $0x14] sm:$0xf]
        %v444 = vld [vmem:[%s225 + $0x18] sm:$0xf]
        %v445 = vld [vmem:[%s225 + $0x1c] sm:$0xf]
        %v446 = vld [vmem:[%s225 + $0x20] sm:$0xf]
        %v447 = vld [vmem:[%s225 + $0x24] sm:$0xf]
        %v448 = vld [vmem:[%s225 + $0x28] sm:$0xf]
        %v449 = vld [vmem:[%s225 + $0x2c] sm:$0xf]
        %v450 = vld [vmem:[%s225 + $0x30] sm:$0xf]
        %v451 = vld [vmem:[%s225 + $0x34] sm:$0xf]
        %v452 = vld [vmem:[%s225 + $0x38] sm:$0xf]
        %v453 = vld [vmem:[%s225 + $0x3c] sm:$0xf]
        %v454 = vld [vmem:[%s225 + $0x40] sm:$0xf]
        %v455 = vld [vmem:[%s225 + $0x44] sm:$0xf]
        %v456 = vld [vmem:[%s225 + $0x48] sm:$0xf]
        %v457 = vld [vmem:[%s225 + $0x4c] sm:$0xf]
        %v458 = vld [vmem:[%s225 + $0x50] sm:$0xf]
        %v459 = vld [vmem:[%s225 + $0x54] sm:$0xf]
        %v460 = vld [vmem:[%s225 + $0x58] sm:$0xf]
        %v461 = vld [vmem:[%s225 + $0x5c] sm:$0xf]
        %v462 = vld [vmem:[%s225 + $0x60] sm:$0xf]
        %v463 = vld [vmem:[%s225 + $0x64] sm:$0xf]
        %v464 = vld [vmem:[%s225 + $0x68] sm:$0xf]
        %v465 = vld [vmem:[%s225 + $0x6c] sm:$0xf]
        %v466 = vld [vmem:[%s225 + $0x70] sm:$0xf]
        %v467 = vld [vmem:[%s225 + $0x74] sm:$0xf]
        %v468 = vld [vmem:[%s225 + $0x78] sm:$0xf]
        %v469 = vld [vmem:[%s225 + $0x7c] sm:$0xf]
        %v470 = vld [vmem:[%s225 + $0x80] sm:$0xf]
        %v471 = vld [vmem:[%s225 + $0x84] sm:$0xf]
        %v472 = vld [vmem:[%s225 + $0x88] sm:$0xf]
        %v473 = vld [vmem:[%s225 + $0x8c] sm:$0xf]
        %v474 = vld [vmem:[%s225 + $0x90] sm:$0xf]
        %v475 = vld [vmem:[%s225 + $0x94] sm:$0xf]
        %v476 = vld [vmem:[%s225 + $0x98] sm:$0xf]
        %v477 = vld [vmem:[%s225 + $0x9c] sm:$0xf]
        %v478 = vld [vmem:[%s225 + $0xa0] sm:$0xf]
        %v479 = vld [vmem:[%s225 + $0xa4] sm:$0xf]
        %v480 = vld [vmem:[%s225 + $0xa8] sm:$0xf]
        %v481 = vld [vmem:[%s225 + $0xac] sm:$0xf]
        %v482 = vld [vmem:[%s225 + $0xb0] sm:$0xf]
        %v483 = vld [vmem:[%s225 + $0xb4] sm:$0xf]
        %v484 = vld [vmem:[%s225 + $0xb8] sm:$0xf]
        %v485 = vld [vmem:[%s225 + $0xbc] sm:$0xf]
        %v486 = vld [vmem:[%s225 + $0xc0] sm:$0xf]
        %v487 = vld [vmem:[%s225 + $0xc4] sm:$0xf]
        %v488 = vld [vmem:[%s225 + $0xc8] sm:$0xf]
        %v489 = vld [vmem:[%s225 + $0xcc] sm:$0xf]
        %v490 = vld [vmem:[%s225 + $0xd0] sm:$0xf]
        %v491 = vld [vmem:[%s225 + $0xd4] sm:$0xf]
        %v492 = vld [vmem:[%s225 + $0xd8] sm:$0xf]
        %v493 = vld [vmem:[%s225 + $0xdc] sm:$0xf]
        %v494 = vld [vmem:[%s225 + $0xe0] sm:$0xf]
        %v495 = vld [vmem:[%s225 + $0xe4] sm:$0xf]
        %v496 = vld [vmem:[%s225 + $0xe8] sm:$0xf]
        %v497 = vld [vmem:[%s225 + $0xec] sm:$0xf]
        %v498 = vld [vmem:[%s225 + $0xf0] sm:$0xf]
        %v499 = vld [vmem:[%s225 + $0xf4] sm:$0xf]
        %v500 = vld [vmem:[%s225 + $0xf8] sm:$0xf]
        %v501 = vld [vmem:[%s225 + $0xfc] sm:$0xf]
        %v502 = vld [vmem:[%s225 + $0x100] sm:$0xf]
        %v503 = vld [vmem:[%s225 + $0x104] sm:$0xf]
        %v504 = vld [vmem:[%s225 + $0x108] sm:$0xf]
        %v505 = vld [vmem:[%s225 + $0x10c] sm:$0xf]
        %v506 = vld [vmem:[%s225 + $0x110] sm:$0xf]
        %v507 = vld [vmem:[%s225 + $0x114] sm:$0xf]
        %v508 = vld [vmem:[%s225 + $0x118] sm:$0xf]
        %v509 = vld [vmem:[%s225 + $0x11c] sm:$0xf]
        %v510 = vld [vmem:[%s225 + $0x120] sm:$0xf]
        %v511 = vld [vmem:[%s225 + $0x124] sm:$0xf]
        %v512 = vld [vmem:[%s225 + $0x128] sm:$0xf]
        %v513 = vld [vmem:[%s225 + $0x12c] sm:$0xf]
        %v514 = vld [vmem:[%s225 + $0x130] sm:$0xf]
        %v515 = vld [vmem:[%s225 + $0x134] sm:$0xf]
        %v516 = vld [vmem:[%s225 + $0x138] sm:$0xf]
        %v517 = vld [vmem:[%s225 + $0x13c] sm:$0xf]
        %v518 = vld [vmem:[%s225 + $0x140] sm:$0xf]
        %v519 = vld [vmem:[%s225 + $0x144] sm:$0xf]
        %v520 = vld [vmem:[%s225 + $0x148] sm:$0xf]
        %v521 = vld [vmem:[%s225 + $0x14c] sm:$0xf]
        %v522 = vld [vmem:[%s225 + $0x150] sm:$0xf]
        %v523 = vld [vmem:[%s225 + $0x154] sm:$0xf]
        %v524 = vld [vmem:[%s225 + $0x158] sm:$0xf]
        %v525 = vld [vmem:[%s225 + $0x15c] sm:$0xf]
        %v526 = vld [vmem:[%s225 + $0x160] sm:$0xf]
        %v527 = vld [vmem:[%s225 + $0x164] sm:$0xf]
        %v528 = vld [vmem:[%s225 + $0x168] sm:$0xf]
        %v529 = vld [vmem:[%s225 + $0x16c] sm:$0xf]
        %v530 = vld [vmem:[%s225 + $0x170] sm:$0xf]
        %v531 = vld [vmem:[%s225 + $0x174] sm:$0xf]
        %v532 = vld [vmem:[%s225 + $0x178] sm:$0xf]
        %v533 = vld [vmem:[%s225 + $0x17c] sm:$0xf]
        %v534 = vld [vmem:[%s225 + $0x180] sm:$0xf]
        %v535 = vld [vmem:[%s225 + $0x184] sm:$0xf]
        %v536 = vld [vmem:[%s225 + $0x188] sm:$0xf]
        %v537 = vld [vmem:[%s225 + $0x18c] sm:$0xf]
        %v538 = vld [vmem:[%s225 + $0x190] sm:$0xf]
        %v539 = vld [vmem:[%s225 + $0x194] sm:$0xf]
        %v540 = vld [vmem:[%s225 + $0x198] sm:$0xf]
        %v541 = vld [vmem:[%s225 + $0x19c] sm:$0xf]
        %v542 = vld [vmem:[%s225 + $0x1a0] sm:$0xf]
        %v543 = vld [vmem:[%s225 + $0x1a4] sm:$0xf]
        %v544 = vld [vmem:[%s225 + $0x1a8] sm:$0xf]
        %v545 = vld [vmem:[%s225 + $0x1ac] sm:$0xf]
        %v546 = vld [vmem:[%s225 + $0x1b0] sm:$0xf]
        %v547 = vld [vmem:[%s225 + $0x1b4] sm:$0xf]
        %v548 = vld [vmem:[%s225 + $0x1b8] sm:$0xf]
        %v549 = vld [vmem:[%s225 + $0x1bc] sm:$0xf]
        %v550 = vld [vmem:[%s225 + $0x1c0] sm:$0xf]
        %v551 = vld [vmem:[%s225 + $0x1c4] sm:$0xf]
        %v552 = vld [vmem:[%s225 + $0x1c8] sm:$0xf]
        %v553 = vld [vmem:[%s225 + $0x1cc] sm:$0xf]
        %v554 = vld [vmem:[%s225 + $0x1d0] sm:$0xf]
        %v555 = vld [vmem:[%s225 + $0x1d4] sm:$0xf]
        %v556 = vld [vmem:[%s225 + $0x1d8] sm:$0xf]
        %v557 = vld [vmem:[%s225 + $0x1dc] sm:$0xf]
        %v558 = vld [vmem:[%s225 + $0x1e0] sm:$0xf]
        %v559 = vld [vmem:[%s225 + $0x1e4] sm:$0xf]
        %v560 = vld [vmem:[%s225 + $0x1e8] sm:$0xf]
        %v561 = vld [vmem:[%s225 + $0x1ec] sm:$0xf]
        %v562 = vld [vmem:[%s225 + $0x1f0] sm:$0xf]
        %v563 = vld [vmem:[%s225 + $0x1f4] sm:$0xf]
        %v564 = vld [vmem:[%s225 + $0x1f8] sm:$0xf]
        %v565 = vld [vmem:[%s225 + $0x1fc] sm:$0xf]
        %v694 = vunpack.c.l.b16 %v310
        %v695 = vunpack.c.h.b16 %v310
        %v696 = vunpack.c.l.b16 %v311
        %v697 = vunpack.c.h.b16 %v311
        %v698 = vunpack.c.l.b16 %v312
        %v699 = vunpack.c.h.b16 %v312
        %v700 = vunpack.c.l.b16 %v313
        %v701 = vunpack.c.h.b16 %v313
        %v702 = vunpack.c.l.b16 %v314
        %v703 = vunpack.c.h.b16 %v314
        %v704 = vunpack.c.l.b16 %v315
        %v705 = vunpack.c.h.b16 %v315
        %v706 = vunpack.c.l.b16 %v316
        %v707 = vunpack.c.h.b16 %v316
        %v708 = vunpack.c.l.b16 %v317
        %v709 = vunpack.c.h.b16 %v317
        %v710 = vunpack.c.l.b16 %v318
        %v711 = vunpack.c.h.b16 %v318
        %v712 = vunpack.c.l.b16 %v319
        %v713 = vunpack.c.h.b16 %v319
        %v714 = vunpack.c.l.b16 %v320
        %v715 = vunpack.c.h.b16 %v320
        %v716 = vunpack.c.l.b16 %v321
        %v717 = vunpack.c.h.b16 %v321
        %v718 = vunpack.c.l.b16 %v322
        %v719 = vunpack.c.h.b16 %v322
        %v720 = vunpack.c.l.b16 %v323
        %v721 = vunpack.c.h.b16 %v323
        %v722 = vunpack.c.l.b16 %v324
        %v723 = vunpack.c.h.b16 %v324
        %v724 = vunpack.c.l.b16 %v325
        %v725 = vunpack.c.h.b16 %v325
        %v726 = vunpack.c.l.b16 %v326
        %v727 = vunpack.c.h.b16 %v326
        %v728 = vunpack.c.l.b16 %v327
        %v729 = vunpack.c.h.b16 %v327
        %v730 = vunpack.c.l.b16 %v328
        %v731 = vunpack.c.h.b16 %v328
        %v732 = vunpack.c.l.b16 %v329
        %v733 = vunpack.c.h.b16 %v329
        %v734 = vunpack.c.l.b16 %v330
        %v735 = vunpack.c.h.b16 %v330
        %v736 = vunpack.c.l.b16 %v331
        %v737 = vunpack.c.h.b16 %v331
        %v738 = vunpack.c.l.b16 %v332
        %v739 = vunpack.c.h.b16 %v332
        %v740 = vunpack.c.l.b16 %v333
        %v741 = vunpack.c.h.b16 %v333
        %v742 = vunpack.c.l.b16 %v334
        %v743 = vunpack.c.h.b16 %v334
        %v744 = vunpack.c.l.b16 %v335
        %v745 = vunpack.c.h.b16 %v335
        %v746 = vunpack.c.l.b16 %v336
        %v747 = vunpack.c.h.b16 %v336
        %v748 = vunpack.c.l.b16 %v337
        %v749 = vunpack.c.h.b16 %v337
        %v750 = vunpack.c.l.b16 %v338
        %v751 = vunpack.c.h.b16 %v338
        %v752 = vunpack.c.l.b16 %v339
        %v753 = vunpack.c.h.b16 %v339
        %v754 = vunpack.c.l.b16 %v340
        %v755 = vunpack.c.h.b16 %v340
        %v756 = vunpack.c.l.b16 %v341
        %v757 = vunpack.c.h.b16 %v341
        %v758 = vunpack.c.l.b16 %v342
        %v759 = vunpack.c.h.b16 %v342
        %v760 = vunpack.c.l.b16 %v343
        %v761 = vunpack.c.h.b16 %v343
        %v762 = vunpack.c.l.b16 %v344
        %v763 = vunpack.c.h.b16 %v344
        %v764 = vunpack.c.l.b16 %v345
        %v765 = vunpack.c.h.b16 %v345
        %v766 = vunpack.c.l.b16 %v346
        %v767 = vunpack.c.h.b16 %v346
        %v768 = vunpack.c.l.b16 %v347
        %v769 = vunpack.c.h.b16 %v347
        %v770 = vunpack.c.l.b16 %v348
        %v771 = vunpack.c.h.b16 %v348
        %v772 = vunpack.c.l.b16 %v349
        %v773 = vunpack.c.h.b16 %v349
        %v774 = vunpack.c.l.b16 %v350
        %v775 = vunpack.c.h.b16 %v350
        %v776 = vunpack.c.l.b16 %v351
        %v777 = vunpack.c.h.b16 %v351
        %v778 = vunpack.c.l.b16 %v352
        %v779 = vunpack.c.h.b16 %v352
        %v780 = vunpack.c.l.b16 %v353
        %v781 = vunpack.c.h.b16 %v353
        %v782 = vunpack.c.l.b16 %v354
        %v783 = vunpack.c.h.b16 %v354
        %v784 = vunpack.c.l.b16 %v355
        %v785 = vunpack.c.h.b16 %v355
        %v786 = vunpack.c.l.b16 %v356
        %v787 = vunpack.c.h.b16 %v356
        %v788 = vunpack.c.l.b16 %v357
        %v789 = vunpack.c.h.b16 %v357
        %v790 = vunpack.c.l.b16 %v358
        %v791 = vunpack.c.h.b16 %v358
        %v792 = vunpack.c.l.b16 %v359
        %v793 = vunpack.c.h.b16 %v359
        %v794 = vunpack.c.l.b16 %v360
        %v795 = vunpack.c.h.b16 %v360
        %v796 = vunpack.c.l.b16 %v361
        %v797 = vunpack.c.h.b16 %v361
        %v798 = vunpack.c.l.b16 %v362
        %v799 = vunpack.c.h.b16 %v362
        %v800 = vunpack.c.l.b16 %v363
        %v801 = vunpack.c.h.b16 %v363
        %v802 = vunpack.c.l.b16 %v364
        %v803 = vunpack.c.h.b16 %v364
        %v804 = vunpack.c.l.b16 %v365
        %v805 = vunpack.c.h.b16 %v365
        %v806 = vunpack.c.l.b16 %v366
        %v807 = vunpack.c.h.b16 %v366
        %v808 = vunpack.c.l.b16 %v367
        %v809 = vunpack.c.h.b16 %v367
        %v810 = vunpack.c.l.b16 %v368
        %v811 = vunpack.c.h.b16 %v368
        %v812 = vunpack.c.l.b16 %v369
        %v813 = vunpack.c.h.b16 %v369
        %v814 = vunpack.c.l.b16 %v370
        %v815 = vunpack.c.h.b16 %v370
        %v816 = vunpack.c.l.b16 %v371
        %v817 = vunpack.c.h.b16 %v371
        %v818 = vunpack.c.l.b16 %v372
        %v819 = vunpack.c.h.b16 %v372
        %v820 = vunpack.c.l.b16 %v373
        %v821 = vunpack.c.h.b16 %v373
        %v822 = vunpack.c.l.b16 %v374
        %v823 = vunpack.c.h.b16 %v374
        %v824 = vunpack.c.l.b16 %v375
        %v825 = vunpack.c.h.b16 %v375
        %v826 = vunpack.c.l.b16 %v376
        %v827 = vunpack.c.h.b16 %v376
        %v828 = vunpack.c.l.b16 %v377
        %v829 = vunpack.c.h.b16 %v377
        %v830 = vunpack.c.l.b16 %v378
        %v831 = vunpack.c.h.b16 %v378
        %v832 = vunpack.c.l.b16 %v379
        %v833 = vunpack.c.h.b16 %v379
        %v834 = vunpack.c.l.b16 %v380
        %v835 = vunpack.c.h.b16 %v380
        %v836 = vunpack.c.l.b16 %v381
        %v837 = vunpack.c.h.b16 %v381
        %v838 = vunpack.c.l.b16 %v382
        %v839 = vunpack.c.h.b16 %v382
        %v840 = vunpack.c.l.b16 %v383
        %v841 = vunpack.c.h.b16 %v383
        %v842 = vunpack.c.l.b16 %v384
        %v843 = vunpack.c.h.b16 %v384
        %v844 = vunpack.c.l.b16 %v385
        %v845 = vunpack.c.h.b16 %v385
        %v846 = vunpack.c.l.b16 %v386
        %v847 = vunpack.c.h.b16 %v386
        %v848 = vunpack.c.l.b16 %v387
        %v849 = vunpack.c.h.b16 %v387
        %v850 = vunpack.c.l.b16 %v388
        %v851 = vunpack.c.h.b16 %v388
        %v852 = vunpack.c.l.b16 %v389
        %v853 = vunpack.c.h.b16 %v389
        %v854 = vunpack.c.l.b16 %v390
        %v855 = vunpack.c.h.b16 %v390
        %v856 = vunpack.c.l.b16 %v391
        %v857 = vunpack.c.h.b16 %v391
        %v858 = vunpack.c.l.b16 %v392
        %v859 = vunpack.c.h.b16 %v392
        %v860 = vunpack.c.l.b16 %v393
        %v861 = vunpack.c.h.b16 %v393
        %v862 = vunpack.c.l.b16 %v394
        %v863 = vunpack.c.h.b16 %v394
        %v864 = vunpack.c.l.b16 %v395
        %v865 = vunpack.c.h.b16 %v395
        %v866 = vunpack.c.l.b16 %v396
        %v867 = vunpack.c.h.b16 %v396
        %v868 = vunpack.c.l.b16 %v397
        %v869 = vunpack.c.h.b16 %v397
        %v870 = vunpack.c.l.b16 %v398
        %v871 = vunpack.c.h.b16 %v398
        %v872 = vunpack.c.l.b16 %v399
        %v873 = vunpack.c.h.b16 %v399
        %v874 = vunpack.c.l.b16 %v400
        %v875 = vunpack.c.h.b16 %v400
        %v876 = vunpack.c.l.b16 %v401
        %v877 = vunpack.c.h.b16 %v401
        %v878 = vunpack.c.l.b16 %v402
        %v879 = vunpack.c.h.b16 %v402
        %v880 = vunpack.c.l.b16 %v403
        %v881 = vunpack.c.h.b16 %v403
        %v882 = vunpack.c.l.b16 %v404
        %v883 = vunpack.c.h.b16 %v404
        %v884 = vunpack.c.l.b16 %v405
        %v885 = vunpack.c.h.b16 %v405
        %v886 = vunpack.c.l.b16 %v406
        %v887 = vunpack.c.h.b16 %v406
        %v888 = vunpack.c.l.b16 %v407
        %v889 = vunpack.c.h.b16 %v407
        %v890 = vunpack.c.l.b16 %v408
        %v891 = vunpack.c.h.b16 %v408
        %v892 = vunpack.c.l.b16 %v409
        %v893 = vunpack.c.h.b16 %v409
        %v894 = vunpack.c.l.b16 %v410
        %v895 = vunpack.c.h.b16 %v410
        %v896 = vunpack.c.l.b16 %v411
        %v897 = vunpack.c.h.b16 %v411
        %v898 = vunpack.c.l.b16 %v412
        %v899 = vunpack.c.h.b16 %v412
        %v900 = vunpack.c.l.b16 %v413
        %v901 = vunpack.c.h.b16 %v413
        %v902 = vunpack.c.l.b16 %v414
        %v903 = vunpack.c.h.b16 %v414
        %v904 = vunpack.c.l.b16 %v415
        %v905 = vunpack.c.h.b16 %v415
        %v906 = vunpack.c.l.b16 %v416
        %v907 = vunpack.c.h.b16 %v416
        %v908 = vunpack.c.l.b16 %v417
        %v909 = vunpack.c.h.b16 %v417
        %v910 = vunpack.c.l.b16 %v418
        %v911 = vunpack.c.h.b16 %v418
        %v912 = vunpack.c.l.b16 %v419
        %v913 = vunpack.c.h.b16 %v419
        %v914 = vunpack.c.l.b16 %v420
        %v915 = vunpack.c.h.b16 %v420
        %v916 = vunpack.c.l.b16 %v421
        %v917 = vunpack.c.h.b16 %v421
        %v918 = vunpack.c.l.b16 %v422
        %v919 = vunpack.c.h.b16 %v422
        %v920 = vunpack.c.l.b16 %v423
        %v921 = vunpack.c.h.b16 %v423
        %v922 = vunpack.c.l.b16 %v424
        %v923 = vunpack.c.h.b16 %v424
        %v924 = vunpack.c.l.b16 %v425
        %v925 = vunpack.c.h.b16 %v425
        %v926 = vunpack.c.l.b16 %v426
        %v927 = vunpack.c.h.b16 %v426
        %v928 = vunpack.c.l.b16 %v427
        %v929 = vunpack.c.h.b16 %v427
        %v930 = vunpack.c.l.b16 %v428
        %v931 = vunpack.c.h.b16 %v428
        %v932 = vunpack.c.l.b16 %v429
        %v933 = vunpack.c.h.b16 %v429
        %v934 = vunpack.c.l.b16 %v430
        %v935 = vunpack.c.h.b16 %v430
        %v936 = vunpack.c.l.b16 %v431
        %v937 = vunpack.c.h.b16 %v431
        %v938 = vunpack.c.l.b16 %v432
        %v939 = vunpack.c.h.b16 %v432
        %v940 = vunpack.c.l.b16 %v433
        %v941 = vunpack.c.h.b16 %v433
        %v942 = vunpack.c.l.b16 %v434
        %v943 = vunpack.c.h.b16 %v434
        %v944 = vunpack.c.l.b16 %v435
        %v945 = vunpack.c.h.b16 %v435
        %v946 = vunpack.c.l.b16 %v436
        %v947 = vunpack.c.h.b16 %v436
        %v948 = vunpack.c.l.b16 %v437
        %v949 = vunpack.c.h.b16 %v437
        %v950 = vpack.c.b16 %v702, %v694
        %v951 = vpack.c.b16 %v703, %v695
        %v952 = vpack.c.b16 %v704, %v696
        %v953 = vpack.c.b16 %v705, %v697
        %v954 = vpack.c.b16 %v706, %v698
        %v955 = vpack.c.b16 %v707, %v699
        %v956 = vpack.c.b16 %v708, %v700
        %v957 = vpack.c.b16 %v709, %v701
        %v958 = vpack.c.b16 %v718, %v710
        %v959 = vpack.c.b16 %v719, %v711
        %v960 = vpack.c.b16 %v720, %v712
        %v961 = vpack.c.b16 %v721, %v713
        %v962 = vpack.c.b16 %v722, %v714
        %v963 = vpack.c.b16 %v723, %v715
        %v964 = vpack.c.b16 %v724, %v716
        %v965 = vpack.c.b16 %v725, %v717
        %v966 = vpack.c.b16 %v734, %v726
        %v967 = vpack.c.b16 %v735, %v727
        %v968 = vpack.c.b16 %v736, %v728
        %v969 = vpack.c.b16 %v737, %v729
        %v970 = vpack.c.b16 %v738, %v730
        %v971 = vpack.c.b16 %v739, %v731
        %v972 = vpack.c.b16 %v740, %v732
        %v973 = vpack.c.b16 %v741, %v733
        %v974 = vpack.c.b16 %v750, %v742
        %v975 = vpack.c.b16 %v751, %v743
        %v976 = vpack.c.b16 %v752, %v744
        %v977 = vpack.c.b16 %v753, %v745
        %v978 = vpack.c.b16 %v754, %v746
        %v979 = vpack.c.b16 %v755, %v747
        %v980 = vpack.c.b16 %v756, %v748
        %v981 = vpack.c.b16 %v757, %v749
        %v982 = vpack.c.b16 %v766, %v758
        %v983 = vpack.c.b16 %v767, %v759
        %v984 = vpack.c.b16 %v768, %v760
        %v985 = vpack.c.b16 %v769, %v761
        %v986 = vpack.c.b16 %v770, %v762
        %v987 = vpack.c.b16 %v771, %v763
        %v988 = vpack.c.b16 %v772, %v764
        %v989 = vpack.c.b16 %v773, %v765
        %v990 = vpack.c.b16 %v782, %v774
        %v991 = vpack.c.b16 %v783, %v775
        %v992 = vpack.c.b16 %v784, %v776
        %v993 = vpack.c.b16 %v785, %v777
        %v994 = vpack.c.b16 %v786, %v778
        %v995 = vpack.c.b16 %v787, %v779
        %v996 = vpack.c.b16 %v788, %v780
        %v997 = vpack.c.b16 %v789, %v781
        %v998 = vpack.c.b16 %v798, %v790
        %v999 = vpack.c.b16 %v799, %v791
        %v1000 = vpack.c.b16 %v800, %v792
        %v1001 = vpack.c.b16 %v801, %v793
        %v1002 = vpack.c.b16 %v802, %v794
        %v1003 = vpack.c.b16 %v803, %v795
        %v1004 = vpack.c.b16 %v804, %v796
        %v1005 = vpack.c.b16 %v805, %v797
        %v1006 = vpack.c.b16 %v814, %v806
        %v1007 = vpack.c.b16 %v815, %v807
        %v1008 = vpack.c.b16 %v816, %v808
        %v1009 = vpack.c.b16 %v817, %v809
        %v1010 = vpack.c.b16 %v818, %v810
        %v1011 = vpack.c.b16 %v819, %v811
        %v1012 = vpack.c.b16 %v820, %v812
        %v1013 = vpack.c.b16 %v821, %v813
        %v1014 = vpack.c.b16 %v830, %v822
        %v1015 = vpack.c.b16 %v831, %v823
        %v1016 = vpack.c.b16 %v832, %v824
        %v1017 = vpack.c.b16 %v833, %v825
        %v1018 = vpack.c.b16 %v834, %v826
        %v1019 = vpack.c.b16 %v835, %v827
        %v1020 = vpack.c.b16 %v836, %v828
        %v1021 = vpack.c.b16 %v837, %v829
        %v1022 = vpack.c.b16 %v846, %v838
        %v1023 = vpack.c.b16 %v847, %v839
        %v1024 = vpack.c.b16 %v848, %v840
        %v1025 = vpack.c.b16 %v849, %v841
        %v1026 = vpack.c.b16 %v850, %v842
        %v1027 = vpack.c.b16 %v851, %v843
        %v1028 = vpack.c.b16 %v852, %v844
        %v1029 = vpack.c.b16 %v853, %v845
        %v1030 = vpack.c.b16 %v862, %v854
        %v1031 = vpack.c.b16 %v863, %v855
        %v1032 = vpack.c.b16 %v864, %v856
        %v1033 = vpack.c.b16 %v865, %v857
        %v1034 = vpack.c.b16 %v866, %v858
        %v1035 = vpack.c.b16 %v867, %v859
        %v1036 = vpack.c.b16 %v868, %v860
        %v1037 = vpack.c.b16 %v869, %v861
        %v1038 = vpack.c.b16 %v878, %v870
        %v1039 = vpack.c.b16 %v879, %v871
        %v1040 = vpack.c.b16 %v880, %v872
        %v1041 = vpack.c.b16 %v881, %v873
        %v1042 = vpack.c.b16 %v882, %v874
        %v1043 = vpack.c.b16 %v883, %v875
        %v1044 = vpack.c.b16 %v884, %v876
        %v1045 = vpack.c.b16 %v885, %v877
        %v1046 = vpack.c.b16 %v894, %v886
        %v1047 = vpack.c.b16 %v895, %v887
        %v1048 = vpack.c.b16 %v896, %v888
        %v1049 = vpack.c.b16 %v897, %v889
        %v1050 = vpack.c.b16 %v898, %v890
        %v1051 = vpack.c.b16 %v899, %v891
        %v1052 = vpack.c.b16 %v900, %v892
        %v1053 = vpack.c.b16 %v901, %v893
        %v1054 = vpack.c.b16 %v910, %v902
        %v1055 = vpack.c.b16 %v911, %v903
        %v1056 = vpack.c.b16 %v912, %v904
        %v1057 = vpack.c.b16 %v913, %v905
        %v1058 = vpack.c.b16 %v914, %v906
        %v1059 = vpack.c.b16 %v915, %v907
        %v1060 = vpack.c.b16 %v916, %v908
        %v1061 = vpack.c.b16 %v917, %v909
        %v1062 = vpack.c.b16 %v926, %v918
        %v1063 = vpack.c.b16 %v927, %v919
        %v1064 = vpack.c.b16 %v928, %v920
        %v1065 = vpack.c.b16 %v929, %v921
        %v1066 = vpack.c.b16 %v930, %v922
        %v1067 = vpack.c.b16 %v931, %v923
        %v1068 = vpack.c.b16 %v932, %v924
        %v1069 = vpack.c.b16 %v933, %v925
        %v1070 = vpack.c.b16 %v942, %v934
        %v1071 = vpack.c.b16 %v943, %v935
        %v1072 = vpack.c.b16 %v944, %v936
        %v1073 = vpack.c.b16 %v945, %v937
        %v1074 = vpack.c.b16 %v946, %v938
        %v1075 = vpack.c.b16 %v947, %v939
        %v1076 = vpack.c.b16 %v948, %v940
        %v1077 = vpack.c.b16 %v949, %v941
        %v1334 = vunpack.c.l.b16 %v438
        %v1335 = vunpack.c.l.b16 %v439
        %v1336 = vunpack.c.l.b16 %v440
        %v1337 = vunpack.c.l.b16 %v441
        %v1338 = vunpack.c.l.b16 %v442
        %v1339 = vunpack.c.l.b16 %v443
        %v1340 = vunpack.c.l.b16 %v444
        %v1341 = vunpack.c.l.b16 %v445
        %v1342 = vunpack.c.l.b16 %v446
        %v1343 = vunpack.c.l.b16 %v447
        %v1344 = vunpack.c.l.b16 %v448
        %v1345 = vunpack.c.l.b16 %v449
        %v1346 = vunpack.c.l.b16 %v450
        %v1347 = vunpack.c.l.b16 %v451
        %v1348 = vunpack.c.l.b16 %v452
        %v1349 = vunpack.c.l.b16 %v453
        %v1350 = vunpack.c.l.b16 %v454
        %v1351 = vunpack.c.l.b16 %v455
        %v1352 = vunpack.c.l.b16 %v456
        %v1353 = vunpack.c.l.b16 %v457
        %v1354 = vunpack.c.l.b16 %v458
        %v1355 = vunpack.c.l.b16 %v459
        %v1356 = vunpack.c.l.b16 %v460
        %v1357 = vunpack.c.l.b16 %v461
        %v1358 = vunpack.c.l.b16 %v462
        %v1359 = vunpack.c.l.b16 %v463
        %v1360 = vunpack.c.l.b16 %v464
        %v1361 = vunpack.c.l.b16 %v465
        %v1362 = vunpack.c.l.b16 %v466
        %v1363 = vunpack.c.l.b16 %v467
        %v1364 = vunpack.c.l.b16 %v468
        %v1365 = vunpack.c.l.b16 %v469
        %v1366 = vunpack.c.l.b16 %v470
        %v1367 = vunpack.c.l.b16 %v471
        %v1368 = vunpack.c.l.b16 %v472
        %v1369 = vunpack.c.l.b16 %v473
        %v1370 = vunpack.c.l.b16 %v474
        %v1371 = vunpack.c.l.b16 %v475
        %v1372 = vunpack.c.l.b16 %v476
        %v1373 = vunpack.c.l.b16 %v477
        %v1374 = vunpack.c.l.b16 %v478
        %v1375 = vunpack.c.l.b16 %v479
        %v1376 = vunpack.c.l.b16 %v480
        %v1377 = vunpack.c.l.b16 %v481
        %v1378 = vunpack.c.l.b16 %v482
        %v1379 = vunpack.c.l.b16 %v483
        %v1380 = vunpack.c.l.b16 %v484
        %v1381 = vunpack.c.l.b16 %v485
        %v1382 = vunpack.c.l.b16 %v486
        %v1383 = vunpack.c.l.b16 %v487
        %v1384 = vunpack.c.l.b16 %v488
        %v1385 = vunpack.c.l.b16 %v489
        %v1386 = vunpack.c.l.b16 %v490
        %v1387 = vunpack.c.l.b16 %v491
        %v1388 = vunpack.c.l.b16 %v492
        %v1389 = vunpack.c.l.b16 %v493
        %v1390 = vunpack.c.l.b16 %v494
        %v1391 = vunpack.c.l.b16 %v495
        %v1392 = vunpack.c.l.b16 %v496
        %v1393 = vunpack.c.l.b16 %v497
        %v1394 = vunpack.c.l.b16 %v498
        %v1395 = vunpack.c.l.b16 %v499
        %v1396 = vunpack.c.l.b16 %v500
        %v1397 = vunpack.c.l.b16 %v501
        %v1398 = vunpack.c.l.b16 %v502
        %v1399 = vunpack.c.l.b16 %v503
        %v1400 = vunpack.c.l.b16 %v504
        %v1401 = vunpack.c.l.b16 %v505
        %v1402 = vunpack.c.l.b16 %v506
        %v1403 = vunpack.c.l.b16 %v507
        %v1404 = vunpack.c.l.b16 %v508
        %v1405 = vunpack.c.l.b16 %v509
        %v1406 = vunpack.c.l.b16 %v510
        %v1407 = vunpack.c.l.b16 %v511
        %v1408 = vunpack.c.l.b16 %v512
        %v1409 = vunpack.c.l.b16 %v513
        %v1410 = vunpack.c.l.b16 %v514
        %v1411 = vunpack.c.l.b16 %v515
        %v1412 = vunpack.c.l.b16 %v516
        %v1413 = vunpack.c.l.b16 %v517
        %v1414 = vunpack.c.l.b16 %v518
        %v1415 = vunpack.c.l.b16 %v519
        %v1416 = vunpack.c.l.b16 %v520
        %v1417 = vunpack.c.l.b16 %v521
        %v1418 = vunpack.c.l.b16 %v522
        %v1419 = vunpack.c.l.b16 %v523
        %v1420 = vunpack.c.l.b16 %v524
        %v1421 = vunpack.c.l.b16 %v525
        %v1422 = vunpack.c.l.b16 %v526
        %v1423 = vunpack.c.l.b16 %v527
        %v1424 = vunpack.c.l.b16 %v528
        %v1425 = vunpack.c.l.b16 %v529
        %v1426 = vunpack.c.l.b16 %v530
        %v1427 = vunpack.c.l.b16 %v531
        %v1428 = vunpack.c.l.b16 %v532
        %v1429 = vunpack.c.l.b16 %v533
        %v1430 = vunpack.c.l.b16 %v534
        %v1431 = vunpack.c.l.b16 %v535
        %v1432 = vunpack.c.l.b16 %v536
        %v1433 = vunpack.c.l.b16 %v537
        %v1434 = vunpack.c.l.b16 %v538
        %v1435 = vunpack.c.l.b16 %v539
        %v1436 = vunpack.c.l.b16 %v540
        %v1437 = vunpack.c.l.b16 %v541
        %v1438 = vunpack.c.l.b16 %v542
        %v1439 = vunpack.c.l.b16 %v543
        %v1440 = vunpack.c.l.b16 %v544
        %v1441 = vunpack.c.l.b16 %v545
        %v1442 = vunpack.c.l.b16 %v546
        %v1443 = vunpack.c.l.b16 %v547
        %v1444 = vunpack.c.l.b16 %v548
        %v1445 = vunpack.c.l.b16 %v549
        %v1446 = vunpack.c.l.b16 %v550
        %v1447 = vunpack.c.l.b16 %v551
        %v1448 = vunpack.c.l.b16 %v552
        %v1449 = vunpack.c.l.b16 %v553
        %v1450 = vunpack.c.l.b16 %v554
        %v1451 = vunpack.c.l.b16 %v555
        %v1452 = vunpack.c.l.b16 %v556
        %v1453 = vunpack.c.l.b16 %v557
        %v1454 = vunpack.c.l.b16 %v558
        %v1455 = vunpack.c.l.b16 %v559
        %v1456 = vunpack.c.l.b16 %v560
        %v1457 = vunpack.c.l.b16 %v561
        %v1458 = vunpack.c.l.b16 %v562
        %v1459 = vunpack.c.l.b16 %v563
        %v1460 = vunpack.c.l.b16 %v564
        %v1461 = vunpack.c.l.b16 %v565
        %v1462 = vpack.c.b16 %v1335, %v1334
        %v1463 = vpack.c.b16 %v1337, %v1336
        %v1464 = vpack.c.b16 %v1339, %v1338
        %v1465 = vpack.c.b16 %v1341, %v1340
        %v1466 = vpack.c.b16 %v1343, %v1342
        %v1467 = vpack.c.b16 %v1345, %v1344
        %v1468 = vpack.c.b16 %v1347, %v1346
        %v1469 = vpack.c.b16 %v1349, %v1348
        %v1470 = vpack.c.b16 %v1351, %v1350
        %v1471 = vpack.c.b16 %v1353, %v1352
        %v1472 = vpack.c.b16 %v1355, %v1354
        %v1473 = vpack.c.b16 %v1357, %v1356
        %v1474 = vpack.c.b16 %v1359, %v1358
        %v1475 = vpack.c.b16 %v1361, %v1360
        %v1476 = vpack.c.b16 %v1363, %v1362
        %v1477 = vpack.c.b16 %v1365, %v1364
        %v1478 = vpack.c.b16 %v1367, %v1366
        %v1479 = vpack.c.b16 %v1369, %v1368
        %v1480 = vpack.c.b16 %v1371, %v1370
        %v1481 = vpack.c.b16 %v1373, %v1372
        %v1482 = vpack.c.b16 %v1375, %v1374
        %v1483 = vpack.c.b16 %v1377, %v1376
        %v1484 = vpack.c.b16 %v1379, %v1378
        %v1485 = vpack.c.b16 %v1381, %v1380
        %v1486 = vpack.c.b16 %v1383, %v1382
        %v1487 = vpack.c.b16 %v1385, %v1384
        %v1488 = vpack.c.b16 %v1387, %v1386
        %v1489 = vpack.c.b16 %v1389, %v1388
        %v1490 = vpack.c.b16 %v1391, %v1390
        %v1491 = vpack.c.b16 %v1393, %v1392
        %v1492 = vpack.c.b16 %v1395, %v1394
        %v1493 = vpack.c.b16 %v1397, %v1396
        %v1494 = vpack.c.b16 %v1399, %v1398
        %v1495 = vpack.c.b16 %v1401, %v1400
        %v1496 = vpack.c.b16 %v1403, %v1402
        %v1497 = vpack.c.b16 %v1405, %v1404
        %v1498 = vpack.c.b16 %v1407, %v1406
        %v1499 = vpack.c.b16 %v1409, %v1408
        %v1500 = vpack.c.b16 %v1411, %v1410
        %v1501 = vpack.c.b16 %v1413, %v1412
        %v1502 = vpack.c.b16 %v1415, %v1414
        %v1503 = vpack.c.b16 %v1417, %v1416
        %v1504 = vpack.c.b16 %v1419, %v1418
        %v1505 = vpack.c.b16 %v1421, %v1420
        %v1506 = vpack.c.b16 %v1423, %v1422
        %v1507 = vpack.c.b16 %v1425, %v1424
        %v1508 = vpack.c.b16 %v1427, %v1426
        %v1509 = vpack.c.b16 %v1429, %v1428
        %v1510 = vpack.c.b16 %v1431, %v1430
        %v1511 = vpack.c.b16 %v1433, %v1432
        %v1512 = vpack.c.b16 %v1435, %v1434
        %v1513 = vpack.c.b16 %v1437, %v1436
        %v1514 = vpack.c.b16 %v1439, %v1438
        %v1515 = vpack.c.b16 %v1441, %v1440
        %v1516 = vpack.c.b16 %v1443, %v1442
        %v1517 = vpack.c.b16 %v1445, %v1444
        %v1518 = vpack.c.b16 %v1447, %v1446
        %v1519 = vpack.c.b16 %v1449, %v1448
        %v1520 = vpack.c.b16 %v1451, %v1450
        %v1521 = vpack.c.b16 %v1453, %v1452
        %v1522 = vpack.c.b16 %v1455, %v1454
        %v1523 = vpack.c.b16 %v1457, %v1456
        %v1524 = vpack.c.b16 %v1459, %v1458
        %v1525 = vpack.c.b16 %v1461, %v1460
        %1590 = vmatprep.subr.bf16.mxu0 0
        %1591 = vmatpush1.bf16.msra.mxu0 %v1462
        %1592 = vmatprep.subr.bf16.mxu0 0
        %1593 = vmatpush1.bf16.msra.mxu0 %v1463
        %1594 = vmatprep.subr.bf16.mxu0 0
        %1595 = vmatpush1.bf16.msra.mxu0 %v1464
        %1596 = vmatprep.subr.bf16.mxu0 0
        %1597 = vmatpush1.bf16.msra.mxu0 %v1465
        %1598 = vmatprep.subr.bf16.mxu0 0
        %1599 = vmatpush1.bf16.msra.mxu0 %v1466
        %1600 = vmatprep.subr.bf16.mxu0 0
        %1601 = vmatpush1.bf16.msra.mxu0 %v1467
        %1602 = vmatprep.subr.bf16.mxu0 0
        %1603 = vmatpush1.bf16.msra.mxu0 %v1468
        %1604 = vmatprep.subr.bf16.mxu0 0
        %1605 = vmatpush1.bf16.msra.mxu0 %v1469
        %1606 = vmatprep.subr.bf16.mxu0 0
        %1607 = vmatpush1.bf16.msra.mxu0 %v1470
        %1608 = vmatprep.subr.bf16.mxu0 0
        %1609 = vmatpush1.bf16.msra.mxu0 %v1471
        %1610 = vmatprep.subr.bf16.mxu0 0
        %1611 = vmatpush1.bf16.msra.mxu0 %v1472
        %1612 = vmatprep.subr.bf16.mxu0 0
        %1613 = vmatpush1.bf16.msra.mxu0 %v1473
        %1614 = vmatprep.subr.bf16.mxu0 0
        %1615 = vmatpush1.bf16.msra.mxu0 %v1474
        %1616 = vmatprep.subr.bf16.mxu0 0
        %1617 = vmatpush1.bf16.msra.mxu0 %v1475
        %1618 = vmatprep.subr.bf16.mxu0 0
        %1619 = vmatpush1.bf16.msra.mxu0 %v1476
        %1620 = vmatprep.subr.bf16.mxu0 0
        %1621 = vmatpush1.bf16.msra.mxu0 %v1477
        %1622 = vmatprep.mubr.bf16.mxu0 %v951
        %1623 = vmatmul.mubr.bf16.gmra.mrb[0].mxu0 %v950
        %v1624 = vpop.f32.mrb[0].mxu0
        %v1625 = vadd.f32 0.0, %v1624
        %v1626 = vpop.f32.mrb[0].mxu0
        %v1627 = vpop.f32.mrb[0].mxu0
        %v1628 = vadd.f32 0.0, %v1627
        %v1629 = vpop.f32.mrb[0].mxu0
        %1630 = vmatprep.mubr.bf16.mxu0 %v959
        %1631 = vmatmul.mubr.bf16.gmra.mrb[0].mxu0 %v958
        %v1632 = vpop.f32.mrb[0].mxu0
        %v1633 = vadd.f32 0.0, %v1632
        %v1634 = vpop.f32.mrb[0].mxu0
        %v1635 = vpop.f32.mrb[0].mxu0
        %v1636 = vadd.f32 0.0, %v1635
        %v1637 = vpop.f32.mrb[0].mxu0
        %1638 = vmatprep.mubr.bf16.mxu0 %v967
        %1639 = vmatmul.mubr.bf16.gmra.mrb[0].mxu0 %v966
        %v1640 = vpop.f32.mrb[0].mxu0
        %v1641 = vadd.f32 0.0, %v1640
        %v1642 = vpop.f32.mrb[0].mxu0
        %v1643 = vpop.f32.mrb[0].mxu0
        %v1644 = vadd.f32 0.0, %v1643
        %v1645 = vpop.f32.mrb[0].mxu0
        %1646 = vmatprep.mubr.bf16.mxu0 %v975
        %1647 = vmatmul.mubr.bf16.gmra.mrb[0].mxu0 %v974
        %v1648 = vpop.f32.mrb[0].mxu0
        %v1649 = vadd.f32 0.0, %v1648
        %v1650 = vpop.f32.mrb[0].mxu0
        %v1651 = vpop.f32.mrb[0].mxu0
        %v1652 = vadd.f32 0.0, %v1651
        %v1653 = vpop.f32.mrb[0].mxu0
        %1654 = vmatprep.mubr.bf16.mxu0 %v983
        %1655 = vmatmul.mubr.bf16.gmra.mrb[0].mxu0 %v982
        %v1656 = vpop.f32.mrb[0].mxu0
        %v1657 = vadd.f32 0.0, %v1656
        %v1658 = vpop.f32.mrb[0].mxu0
        %v1659 = vpop.f32.mrb[0].mxu0
        %v1660 = vadd.f32 0.0, %v1659
        %v1661 = vpop.f32.mrb[0].mxu0
        %1662 = vmatprep.mubr.bf16.mxu0 %v991
        %1663 = vmatmul.mubr.bf16.gmra.mrb[0].mxu0 %v990
        %v1664 = vpop.f32.mrb[0].mxu0
        %v1665 = vadd.f32 0.0, %v1664
        %v1666 = vpop.f32.mrb[0].mxu0
        %v1667 = vpop.f32.mrb[0].mxu0
        %v1668 = vadd.f32 0.0, %v1667
        %v1669 = vpop.f32.mrb[0].mxu0
        %1670 = vmatprep.mubr.bf16.mxu0 %v999
        %1671 = vmatmul.mubr.bf16.gmra.mrb[0].mxu0 %v998
        %v1672 = vpop.f32.mrb[0].mxu0
        %v1673 = vadd.f32 0.0, %v1672
        %v1674 = vpop.f32.mrb[0].mxu0
        %v1675 = vpop.f32.mrb[0].mxu0
        %v1676 = vadd.f32 0.0, %v1675
        %v1677 = vpop.f32.mrb[0].mxu0
        %1678 = vmatprep.mubr.bf16.mxu0 %v1007
        %1679 = vmatmul.mubr.bf16.gmra.mrb[0].mxu0 %v1006
        %v1680 = vpop.f32.mrb[0].mxu0
        %v1681 = vadd.f32 0.0, %v1680
        %v1682 = vpop.f32.mrb[0].mxu0
        %v1683 = vpop.f32.mrb[0].mxu0
        %v1684 = vadd.f32 0.0, %v1683
        %v1685 = vpop.f32.mrb[0].mxu0
        %1686 = vmatprep.mubr.bf16.mxu0 %v1015
        %1687 = vmatmul.mubr.bf16.gmra.mrb[0].mxu0 %v1014
        %v1688 = vpop.f32.mrb[0].mxu0
        %v1689 = vadd.f32 0.0, %v1688
        %v1690 = vpop.f32.mrb[0].mxu0
        %v1691 = vpop.f32.mrb[0].mxu0
        %v1692 = vadd.f32 0.0, %v1691
        %v1693 = vpop.f32.mrb[0].mxu0
        %1694 = vmatprep.mubr.bf16.mxu0 %v1023
        %1695 = vmatmul.mubr.bf16.gmra.mrb[0].mxu0 %v1022
        %v1696 = vpop.f32.mrb[0].mxu0
        %v1697 = vadd.f32 0.0, %v1696
        %v1698 = vpop.f32.mrb[0].mxu0
        %v1699 = vpop.f32.mrb[0].mxu0
        %v1700 = vadd.f32 0.0, %v1699
        %v1701 = vpop.f32.mrb[0].mxu0
        %1702 = vmatprep.mubr.bf16.mxu0 %v1031
        %1703 = vmatmul.mubr.bf16.gmra.mrb[0].mxu0 %v1030
        %v1704 = vpop.f32.mrb[0].mxu0
        %v1705 = vadd.f32 0.0, %v1704
        %v1706 = vpop.f32.mrb[0].mxu0
        %v1707 = vpop.f32.mrb[0].mxu0
        %v1708 = vadd.f32 0.0, %v1707
        %v1709 = vpop.f32.mrb[0].mxu0
        %1710 = vmatprep.mubr.bf16.mxu0 %v1039
        %1711 = vmatmul.mubr.bf16.gmra.mrb[0].mxu0 %v1038
        %v1712 = vpop.f32.mrb[0].mxu0
        %v1713 = vadd.f32 0.0, %v1712
        %v1714 = vpop.f32.mrb[0].mxu0
        %v1715 = vpop.f32.mrb[0].mxu0
        %v1716 = vadd.f32 0.0, %v1715
        %v1717 = vpop.f32.mrb[0].mxu0
        %1718 = vmatprep.mubr.bf16.mxu0 %v1047
        %1719 = vmatmul.mubr.bf16.gmra.mrb[0].mxu0 %v1046
        %v1720 = vpop.f32.mrb[0].mxu0
        %v1721 = vadd.f32 0.0, %v1720
        %v1722 = vpop.f32.mrb[0].mxu0
        %v1723 = vpop.f32.mrb[0].mxu0
        %v1724 = vadd.f32 0.0, %v1723
        %v1725 = vpop.f32.mrb[0].mxu0
        %1726 = vmatprep.mubr.bf16.mxu0 %v1055
        %1727 = vmatmul.mubr.bf16.gmra.mrb[0].mxu0 %v1054
        %v1728 = vpop.f32.mrb[0].mxu0
        %v1729 = vadd.f32 0.0, %v1728
        %v1730 = vpop.f32.mrb[0].mxu0
        %v1731 = vpop.f32.mrb[0].mxu0
        %v1732 = vadd.f32 0.0, %v1731
        %v1733 = vpop.f32.mrb[0].mxu0
        %1734 = vmatprep.mubr.bf16.mxu0 %v1063
        %1735 = vmatmul.mubr.bf16.gmra.mrb[0].mxu0 %v1062
        %v1736 = vpop.f32.mrb[0].mxu0
        %v1737 = vadd.f32 0.0, %v1736
        %v1738 = vpop.f32.mrb[0].mxu0
        %v1739 = vpop.f32.mrb[0].mxu0
        %v1740 = vadd.f32 0.0, %v1739
        %v1741 = vpop.f32.mrb[0].mxu0
        %1742 = vmatprep.mubr.bf16.mxu0 %v1071
        %1743 = vmatmul.mubr.bf16.gmra.mrb[0].mxu0 %v1070
        %v1744 = vpop.f32.mrb[0].mxu0
        %v1745 = vadd.f32 0.0, %v1744
        %v1746 = vpop.f32.mrb[0].mxu0
        %v1747 = vpop.f32.mrb[0].mxu0
        %v1748 = vadd.f32 0.0, %v1747
        %v1749 = vpop.f32.mrb[0].mxu0
        %1750 = vdwg.mxu0
        %1751 = vmatprep.subr.bf16.mxu0 0
        %1752 = vmatpush1.bf16.msra.mxu0 %v1478
        %1753 = vmatprep.subr.bf16.mxu0 0
        %1754 = vmatpush1.bf16.msra.mxu0 %v1479
        %1755 = vmatprep.subr.bf16.mxu0 0
        %1756 = vmatpush1.bf16.msra.mxu0 %v1480
        %1757 = vmatprep.subr.bf16.mxu0 0
        %1758 = vmatpush1.bf16.msra.mxu0 %v1481
        %1759 = vmatprep.subr.bf16.mxu0 0
        %1760 = vmatpush1.bf16.msra.mxu0 %v1482
        %1761 = vmatprep.subr.bf16.mxu0 0
        %1762 = vmatpush1.bf16.msra.mxu0 %v1483
        %1763 = vmatprep.subr.bf16.mxu0 0
        %1764 = vmatpush1.bf16.msra.mxu0 %v1484
        %1765 = vmatprep.subr.bf16.mxu0 0
        %1766 = vmatpush1.bf16.msra.mxu0 %v1485
        %1767 = vmatprep.subr.bf16.mxu0 0
        %1768 = vmatpush1.bf16.msra.mxu0 %v1486
        %1769 = vmatprep.subr.bf16.mxu0 0
        %1770 = vmatpush1.bf16.msra.mxu0 %v1487
        %1771 = vmatprep.subr.bf16.mxu0 0
        %1772 = vmatpush1.bf16.msra.mxu0 %v1488
        %1773 = vmatprep.subr.bf16.mxu0 0
        %1774 = vmatpush1.bf16.msra.mxu0 %v1489
        %1775 = vmatprep.subr.bf16.mxu0 0
        %1776 = vmatpush1.bf16.msra.mxu0 %v1490
        %1777 = vmatprep.subr.bf16.mxu0 0
        %1778 = vmatpush1.bf16.msra.mxu0 %v1491
        %1779 = vmatprep.subr.bf16.mxu0 0
        %1780 = vmatpush1.bf16.msra.mxu0 %v1492
        %1781 = vmatprep.subr.bf16.mxu0 0
        %1782 = vmatpush1.bf16.msra.mxu0 %v1493
        %1783 = vmatprep.mubr.bf16.mxu0 %v953
        %1784 = vmatmul.mubr.bf16.gmra.mrb[0].mxu0 %v952
        %v1785 = vpop.f32.mrb[0].mxu0
        %v1786 = vadd.f32 %v1625, %v1785
        %v1787 = vpop.f32.mrb[0].mxu0
        %v1788 = vpop.f32.mrb[0].mxu0
        %v1789 = vadd.f32 %v1628, %v1788
        %v1790 = vpop.f32.mrb[0].mxu0
        %1791 = vmatprep.mubr.bf16.mxu0 %v961
        %1792 = vmatmul.mubr.bf16.gmra.mrb[0].mxu0 %v960
        %v1793 = vpop.f32.mrb[0].mxu0
        %v1794 = vadd.f32 %v1633, %v1793
        %v1795 = vpop.f32.mrb[0].mxu0
        %v1796 = vpop.f32.mrb[0].mxu0
        %v1797 = vadd.f32 %v1636, %v1796
        %v1798 = vpop.f32.mrb[0].mxu0
        %1799 = vmatprep.mubr.bf16.mxu0 %v969
        %1800 = vmatmul.mubr.bf16.gmra.mrb[0].mxu0 %v968
        %v1801 = vpop.f32.mrb[0].mxu0
        %v1802 = vadd.f32 %v1641, %v1801
        %v1803 = vpop.f32.mrb[0].mxu0
        %v1804 = vpop.f32.mrb[0].mxu0
        %v1805 = vadd.f32 %v1644, %v1804
        %v1806 = vpop.f32.mrb[0].mxu0
        %1807 = vmatprep.mubr.bf16.mxu0 %v977
        %1808 = vmatmul.mubr.bf16.gmra.mrb[0].mxu0 %v976
        %v1809 = vpop.f32.mrb[0].mxu0
        %v1810 = vadd.f32 %v1649, %v1809
        %v1811 = vpop.f32.mrb[0].mxu0
        %v1812 = vpop.f32.mrb[0].mxu0
        %v1813 = vadd.f32 %v1652, %v1812
        %v1814 = vpop.f32.mrb[0].mxu0
        %1815 = vmatprep.mubr.bf16.mxu0 %v985
        %1816 = vmatmul.mubr.bf16.gmra.mrb[0].mxu0 %v984
        %v1817 = vpop.f32.mrb[0].mxu0
        %v1818 = vadd.f32 %v1657, %v1817
        %v1819 = vpop.f32.mrb[0].mxu0
        %v1820 = vpop.f32.mrb[0].mxu0
        %v1821 = vadd.f32 %v1660, %v1820
        %v1822 = vpop.f32.mrb[0].mxu0
        %1823 = vmatprep.mubr.bf16.mxu0 %v993
        %1824 = vmatmul.mubr.bf16.gmra.mrb[0].mxu0 %v992
        %v1825 = vpop.f32.mrb[0].mxu0
        %v1826 = vadd.f32 %v1665, %v1825
        %v1827 = vpop.f32.mrb[0].mxu0
        %v1828 = vpop.f32.mrb[0].mxu0
        %v1829 = vadd.f32 %v1668, %v1828
        %v1830 = vpop.f32.mrb[0].mxu0
        %1831 = vmatprep.mubr.bf16.mxu0 %v1001
        %1832 = vmatmul.mubr.bf16.gmra.mrb[0].mxu0 %v1000
        %v1833 = vpop.f32.mrb[0].mxu0
        %v1834 = vadd.f32 %v1673, %v1833
        %v1835 = vpop.f32.mrb[0].mxu0
        %v1836 = vpop.f32.mrb[0].mxu0
        %v1837 = vadd.f32 %v1676, %v1836
        %v1838 = vpop.f32.mrb[0].mxu0
        %1839 = vmatprep.mubr.bf16.mxu0 %v1009
        %1840 = vmatmul.mubr.bf16.gmra.mrb[0].mxu0 %v1008
        %v1841 = vpop.f32.mrb[0].mxu0
        %v1842 = vadd.f32 %v1681, %v1841
        %v1843 = vpop.f32.mrb[0].mxu0
        %v1844 = vpop.f32.mrb[0].mxu0
        %v1845 = vadd.f32 %v1684, %v1844
        %v1846 = vpop.f32.mrb[0].mxu0
        %1847 = vmatprep.mubr.bf16.mxu0 %v1017
        %1848 = vmatmul.mubr.bf16.gmra.mrb[0].mxu0 %v1016
        %v1849 = vpop.f32.mrb[0].mxu0
        %v1850 = vadd.f32 %v1689, %v1849
        %v1851 = vpop.f32.mrb[0].mxu0
        %v1852 = vpop.f32.mrb[0].mxu0
        %v1853 = vadd.f32 %v1692, %v1852
        %v1854 = vpop.f32.mrb[0].mxu0
        %1855 = vmatprep.mubr.bf16.mxu0 %v1025
        %1856 = vmatmul.mubr.bf16.gmra.mrb[0].mxu0 %v1024
        %v1857 = vpop.f32.mrb[0].mxu0
        %v1858 = vadd.f32 %v1697, %v1857
        %v1859 = vpop.f32.mrb[0].mxu0
        %v1860 = vpop.f32.mrb[0].mxu0
        %v1861 = vadd.f32 %v1700, %v1860
        %v1862 = vpop.f32.mrb[0].mxu0
        %1863 = vmatprep.mubr.bf16.mxu0 %v1033
        %1864 = vmatmul.mubr.bf16.gmra.mrb[0].mxu0 %v1032
        %v1865 = vpop.f32.mrb[0].mxu0
        %v1866 = vadd.f32 %v1705, %v1865
        %v1867 = vpop.f32.mrb[0].mxu0
        %v1868 = vpop.f32.mrb[0].mxu0
        %v1869 = vadd.f32 %v1708, %v1868
        %v1870 = vpop.f32.mrb[0].mxu0
        %1871 = vmatprep.mubr.bf16.mxu0 %v1041
        %1872 = vmatmul.mubr.bf16.gmra.mrb[0].mxu0 %v1040
        %v1873 = vpop.f32.mrb[0].mxu0
        %v1874 = vadd.f32 %v1713, %v1873
        %v1875 = vpop.f32.mrb[0].mxu0
        %v1876 = vpop.f32.mrb[0].mxu0
        %v1877 = vadd.f32 %v1716, %v1876
        %v1878 = vpop.f32.mrb[0].mxu0
        %1879 = vmatprep.mubr.bf16.mxu0 %v1049
        %1880 = vmatmul.mubr.bf16.gmra.mrb[0].mxu0 %v1048
        %v1881 = vpop.f32.mrb[0].mxu0
        %v1882 = vadd.f32 %v1721, %v1881
        %v1883 = vpop.f32.mrb[0].mxu0
        %v1884 = vpop.f32.mrb[0].mxu0
        %v1885 = vadd.f32 %v1724, %v1884
        %v1886 = vpop.f32.mrb[0].mxu0
        %1887 = vmatprep.mubr.bf16.mxu0 %v1057
        %1888 = vmatmul.mubr.bf16.gmra.mrb[0].mxu0 %v1056
        %v1889 = vpop.f32.mrb[0].mxu0
        %v1890 = vadd.f32 %v1729, %v1889
        %v1891 = vpop.f32.mrb[0].mxu0
        %v1892 = vpop.f32.mrb[0].mxu0
        %v1893 = vadd.f32 %v1732, %v1892
        %v1894 = vpop.f32.mrb[0].mxu0
        %1895 = vmatprep.mubr.bf16.mxu0 %v1065
        %1896 = vmatmul.mubr.bf16.gmra.mrb[0].mxu0 %v1064
        %v1897 = vpop.f32.mrb[0].mxu0
        %v1898 = vadd.f32 %v1737, %v1897
        %v1899 = vpop.f32.mrb[0].mxu0
        %v1900 = vpop.f32.mrb[0].mxu0
        %v1901 = vadd.f32 %v1740, %v1900
        %v1902 = vpop.f32.mrb[0].mxu0
        %1903 = vmatprep.mubr.bf16.mxu0 %v1073
        %1904 = vmatmul.mubr.bf16.gmra.mrb[0].mxu0 %v1072
        %v1905 = vpop.f32.mrb[0].mxu0
        %v1906 = vadd.f32 %v1745, %v1905
        %v1907 = vpop.f32.mrb[0].mxu0
        %v1908 = vpop.f32.mrb[0].mxu0
        %v1909 = vadd.f32 %v1748, %v1908
        %v1910 = vpop.f32.mrb[0].mxu0
        %1911 = vdwg.mxu0
        %1912 = vmatprep.subr.bf16.mxu0 0
        %1913 = vmatpush1.bf16.msra.mxu0 %v1494
        %1914 = vmatprep.subr.bf16.mxu0 0
        %1915 = vmatpush1.bf16.msra.mxu0 %v1495
        %1916 = vmatprep.subr.bf16.mxu0 0
        %1917 = vmatpush1.bf16.msra.mxu0 %v1496
        %1918 = vmatprep.subr.bf16.mxu0 0
        %1919 = vmatpush1.bf16.msra.mxu0 %v1497
        %1920 = vmatprep.subr.bf16.mxu0 0
        %1921 = vmatpush1.bf16.msra.mxu0 %v1498
        %1922 = vmatprep.subr.bf16.mxu0 0
        %1923 = vmatpush1.bf16.msra.mxu0 %v1499
        %1924 = vmatprep.subr.bf16.mxu0 0
        %1925 = vmatpush1.bf16.msra.mxu0 %v1500
        %1926 = vmatprep.subr.bf16.mxu0 0
        %1927 = vmatpush1.bf16.msra.mxu0 %v1501
        %1928 = vmatprep.subr.bf16.mxu0 0
        %1929 = vmatpush1.bf16.msra.mxu0 %v1502
        %1930 = vmatprep.subr.bf16.mxu0 0
        %1931 = vmatpush1.bf16.msra.mxu0 %v1503
        %1932 = vmatprep.subr.bf16.mxu0 0
        %1933 = vmatpush1.bf16.msra.mxu0 %v1504
        %1934 = vmatprep.subr.bf16.mxu0 0
        %1935 = vmatpush1.bf16.msra.mxu0 %v1505
        %1936 = vmatprep.subr.bf16.mxu0 0
        %1937 = vmatpush1.bf16.msra.mxu0 %v1506
        %1938 = vmatprep.subr.bf16.mxu0 0
        %1939 = vmatpush1.bf16.msra.mxu0 %v1507
        %1940 = vmatprep.subr.bf16.mxu0 0
        %1941 = vmatpush1.bf16.msra.mxu0 %v1508
        %1942 = vmatprep.subr.bf16.mxu0 0
        %1943 = vmatpush1.bf16.msra.mxu0 %v1509
        %1944 = vmatprep.mubr.bf16.mxu0 %v955
        %1945 = vmatmul.mubr.bf16.gmra.mrb[0].mxu0 %v954
        %v1946 = vpop.f32.mrb[0].mxu0
        %v1947 = vadd.f32 %v1786, %v1946
        %v1948 = vpop.f32.mrb[0].mxu0
        %v1949 = vpop.f32.mrb[0].mxu0
        %v1950 = vadd.f32 %v1789, %v1949
        %v1951 = vpop.f32.mrb[0].mxu0
        %1952 = vmatprep.mubr.bf16.mxu0 %v963
        %1953 = vmatmul.mubr.bf16.gmra.mrb[0].mxu0 %v962
        %v1954 = vpop.f32.mrb[0].mxu0
        %v1955 = vadd.f32 %v1794, %v1954
        %v1956 = vpop.f32.mrb[0].mxu0
        %v1957 = vpop.f32.mrb[0].mxu0
        %v1958 = vadd.f32 %v1797, %v1957
        %v1959 = vpop.f32.mrb[0].mxu0
        %1960 = vmatprep.mubr.bf16.mxu0 %v971
        %1961 = vmatmul.mubr.bf16.gmra.mrb[0].mxu0 %v970
        %v1962 = vpop.f32.mrb[0].mxu0
        %v1963 = vadd.f32 %v1802, %v1962
        %v1964 = vpop.f32.mrb[0].mxu0
        %v1965 = vpop.f32.mrb[0].mxu0
        %v1966 = vadd.f32 %v1805, %v1965
        %v1967 = vpop.f32.mrb[0].mxu0
        %1968 = vmatprep.mubr.bf16.mxu0 %v979
        %1969 = vmatmul.mubr.bf16.gmra.mrb[0].mxu0 %v978
        %v1970 = vpop.f32.mrb[0].mxu0
        %v1971 = vadd.f32 %v1810, %v1970
        %v1972 = vpop.f32.mrb[0].mxu0
        %v1973 = vpop.f32.mrb[0].mxu0
        %v1974 = vadd.f32 %v1813, %v1973
        %v1975 = vpop.f32.mrb[0].mxu0
        %1976 = vmatprep.mubr.bf16.mxu0 %v987
        %1977 = vmatmul.mubr.bf16.gmra.mrb[0].mxu0 %v986
        %v1978 = vpop.f32.mrb[0].mxu0
        %v1979 = vadd.f32 %v1818, %v1978
        %v1980 = vpop.f32.mrb[0].mxu0
        %v1981 = vpop.f32.mrb[0].mxu0
        %v1982 = vadd.f32 %v1821, %v1981
        %v1983 = vpop.f32.mrb[0].mxu0
        %1984 = vmatprep.mubr.bf16.mxu0 %v995
        %1985 = vmatmul.mubr.bf16.gmra.mrb[0].mxu0 %v994
        %v1986 = vpop.f32.mrb[0].mxu0
        %v1987 = vadd.f32 %v1826, %v1986
        %v1988 = vpop.f32.mrb[0].mxu0
        %v1989 = vpop.f32.mrb[0].mxu0
        %v1990 = vadd.f32 %v1829, %v1989
        %v1991 = vpop.f32.mrb[0].mxu0
        %1992 = vmatprep.mubr.bf16.mxu0 %v1003
        %1993 = vmatmul.mubr.bf16.gmra.mrb[0].mxu0 %v1002
        %v1994 = vpop.f32.mrb[0].mxu0
        %v1995 = vadd.f32 %v1834, %v1994
        %v1996 = vpop.f32.mrb[0].mxu0
        %v1997 = vpop.f32.mrb[0].mxu0
        %v1998 = vadd.f32 %v1837, %v1997
        %v1999 = vpop.f32.mrb[0].mxu0
        %2000 = vmatprep.mubr.bf16.mxu0 %v1011
        %2001 = vmatmul.mubr.bf16.gmra.mrb[0].mxu0 %v1010
        %v2002 = vpop.f32.mrb[0].mxu0
        %v2003 = vadd.f32 %v1842, %v2002
        %v2004 = vpop.f32.mrb[0].mxu0
        %v2005 = vpop.f32.mrb[0].mxu0
        %v2006 = vadd.f32 %v1845, %v2005
        %v2007 = vpop.f32.mrb[0].mxu0
        %2008 = vmatprep.mubr.bf16.mxu0 %v1019
        %2009 = vmatmul.mubr.bf16.gmra.mrb[0].mxu0 %v1018
        %v2010 = vpop.f32.mrb[0].mxu0
        %v2011 = vadd.f32 %v1850, %v2010
        %v2012 = vpop.f32.mrb[0].mxu0
        %v2013 = vpop.f32.mrb[0].mxu0
        %v2014 = vadd.f32 %v1853, %v2013
        %v2015 = vpop.f32.mrb[0].mxu0
        %2016 = vmatprep.mubr.bf16.mxu0 %v1027
        %2017 = vmatmul.mubr.bf16.gmra.mrb[0].mxu0 %v1026
        %v2018 = vpop.f32.mrb[0].mxu0
        %v2019 = vadd.f32 %v1858, %v2018
        %v2020 = vpop.f32.mrb[0].mxu0
        %v2021 = vpop.f32.mrb[0].mxu0
        %v2022 = vadd.f32 %v1861, %v2021
        %v2023 = vpop.f32.mrb[0].mxu0
        %2024 = vmatprep.mubr.bf16.mxu0 %v1035
        %2025 = vmatmul.mubr.bf16.gmra.mrb[0].mxu0 %v1034
        %v2026 = vpop.f32.mrb[0].mxu0
        %v2027 = vadd.f32 %v1866, %v2026
        %v2028 = vpop.f32.mrb[0].mxu0
        %v2029 = vpop.f32.mrb[0].mxu0
        %v2030 = vadd.f32 %v1869, %v2029
        %v2031 = vpop.f32.mrb[0].mxu0
        %2032 = vmatprep.mubr.bf16.mxu0 %v1043
        %2033 = vmatmul.mubr.bf16.gmra.mrb[0].mxu0 %v1042
        %v2034 = vpop.f32.mrb[0].mxu0
        %v2035 = vadd.f32 %v1874, %v2034
        %v2036 = vpop.f32.mrb[0].mxu0
        %v2037 = vpop.f32.mrb[0].mxu0
        %v2038 = vadd.f32 %v1877, %v2037
        %v2039 = vpop.f32.mrb[0].mxu0
        %2040 = vmatprep.mubr.bf16.mxu0 %v1051
        %2041 = vmatmul.mubr.bf16.gmra.mrb[0].mxu0 %v1050
        %v2042 = vpop.f32.mrb[0].mxu0
        %v2043 = vadd.f32 %v1882, %v2042
        %v2044 = vpop.f32.mrb[0].mxu0
        %v2045 = vpop.f32.mrb[0].mxu0
        %v2046 = vadd.f32 %v1885, %v2045
        %v2047 = vpop.f32.mrb[0].mxu0
        %2048 = vmatprep.mubr.bf16.mxu0 %v1059
        %2049 = vmatmul.mubr.bf16.gmra.mrb[0].mxu0 %v1058
        %v2050 = vpop.f32.mrb[0].mxu0
        %v2051 = vadd.f32 %v1890, %v2050
        %v2052 = vpop.f32.mrb[0].mxu0
        %v2053 = vpop.f32.mrb[0].mxu0
        %v2054 = vadd.f32 %v1893, %v2053
        %v2055 = vpop.f32.mrb[0].mxu0
        %2056 = vmatprep.mubr.bf16.mxu0 %v1067
        %2057 = vmatmul.mubr.bf16.gmra.mrb[0].mxu0 %v1066
        %v2058 = vpop.f32.mrb[0].mxu0
        %v2059 = vadd.f32 %v1898, %v2058
        %v2060 = vpop.f32.mrb[0].mxu0
        %v2061 = vpop.f32.mrb[0].mxu0
        %v2062 = vadd.f32 %v1901, %v2061
        %v2063 = vpop.f32.mrb[0].mxu0
        %2064 = vmatprep.mubr.bf16.mxu0 %v1075
        %2065 = vmatmul.mubr.bf16.gmra.mrb[0].mxu0 %v1074
        %v2066 = vpop.f32.mrb[0].mxu0
        %v2067 = vadd.f32 %v1906, %v2066
        %v2068 = vpop.f32.mrb[0].mxu0
        %v2069 = vpop.f32.mrb[0].mxu0
        %v2070 = vadd.f32 %v1909, %v2069
        %v2071 = vpop.f32.mrb[0].mxu0
        %2072 = vdwg.mxu0
        %2073 = vmatprep.subr.bf16.mxu0 0
        %2074 = vmatpush1.bf16.msra.mxu0 %v1510
        %2075 = vmatprep.subr.bf16.mxu0 0
        %2076 = vmatpush1.bf16.msra.mxu0 %v1511
        %2077 = vmatprep.subr.bf16.mxu0 0
        %2078 = vmatpush1.bf16.msra.mxu0 %v1512
        %2079 = vmatprep.subr.bf16.mxu0 0
        %2080 = vmatpush1.bf16.msra.mxu0 %v1513
        %2081 = vmatprep.subr.bf16.mxu0 0
        %2082 = vmatpush1.bf16.msra.mxu0 %v1514
        %2083 = vmatprep.subr.bf16.mxu0 0
        %2084 = vmatpush1.bf16.msra.mxu0 %v1515
        %2085 = vmatprep.subr.bf16.mxu0 0
        %2086 = vmatpush1.bf16.msra.mxu0 %v1516
        %2087 = vmatprep.subr.bf16.mxu0 0
        %2088 = vmatpush1.bf16.msra.mxu0 %v1517
        %2089 = vmatprep.subr.bf16.mxu0 0
        %2090 = vmatpush1.bf16.msra.mxu0 %v1518
        %2091 = vmatprep.subr.bf16.mxu0 0
        %2092 = vmatpush1.bf16.msra.mxu0 %v1519
        %2093 = vmatprep.subr.bf16.mxu0 0
        %2094 = vmatpush1.bf16.msra.mxu0 %v1520
        %2095 = vmatprep.subr.bf16.mxu0 0
        %2096 = vmatpush1.bf16.msra.mxu0 %v1521
        %2097 = vmatprep.subr.bf16.mxu0 0
        %2098 = vmatpush1.bf16.msra.mxu0 %v1522
        %2099 = vmatprep.subr.bf16.mxu0 0
        %2100 = vmatpush1.bf16.msra.mxu0 %v1523
        %2101 = vmatprep.subr.bf16.mxu0 0
        %2102 = vmatpush1.bf16.msra.mxu0 %v1524
        %2103 = vmatprep.subr.bf16.mxu0 0
        %2104 = vmatpush1.bf16.msra.mxu0 %v1525
        %2105 = vmatprep.mubr.bf16.mxu0 %v957
        %2106 = vmatmul.mubr.bf16.gmra.mrb[0].mxu0 %v956
        %v2107 = vpop.f32.mrb[0].mxu0
        %v2108 = vadd.f32 %v1947, %v2107
        %v2109 = vpop.f32.mrb[0].mxu0
        %v2110 = vpop.f32.mrb[0].mxu0
        %v2111 = vadd.f32 %v1950, %v2110
        %v2112 = vpop.f32.mrb[0].mxu0
        %2113 = vmatprep.mubr.bf16.mxu0 %v965
        %2114 = vmatmul.mubr.bf16.gmra.mrb[0].mxu0 %v964
        %v2115 = vpop.f32.mrb[0].mxu0
        %v2116 = vadd.f32 %v1955, %v2115
        %v2117 = vpop.f32.mrb[0].mxu0
        %v2118 = vpop.f32.mrb[0].mxu0
        %v2119 = vadd.f32 %v1958, %v2118
        %v2120 = vpop.f32.mrb[0].mxu0
        %2121 = vmatprep.mubr.bf16.mxu0 %v973
        %2122 = vmatmul.mubr.bf16.gmra.mrb[0].mxu0 %v972
        %v2123 = vpop.f32.mrb[0].mxu0
        %v2124 = vadd.f32 %v1963, %v2123
        %v2125 = vpop.f32.mrb[0].mxu0
        %v2126 = vpop.f32.mrb[0].mxu0
        %v2127 = vadd.f32 %v1966, %v2126
        %v2128 = vpop.f32.mrb[0].mxu0
        %2129 = vmatprep.mubr.bf16.mxu0 %v981
        %2130 = vmatmul.mubr.bf16.gmra.mrb[0].mxu0 %v980
        %v2131 = vpop.f32.mrb[0].mxu0
        %v2132 = vadd.f32 %v1971, %v2131
        %v2133 = vpop.f32.mrb[0].mxu0
        %v2134 = vpop.f32.mrb[0].mxu0
        %v2135 = vadd.f32 %v1974, %v2134
        %v2136 = vpop.f32.mrb[0].mxu0
        %2137 = vmatprep.mubr.bf16.mxu0 %v989
        %2138 = vmatmul.mubr.bf16.gmra.mrb[0].mxu0 %v988
        %v2139 = vpop.f32.mrb[0].mxu0
        %v2140 = vadd.f32 %v1979, %v2139
        %v2141 = vpop.f32.mrb[0].mxu0
        %v2142 = vpop.f32.mrb[0].mxu0
        %v2143 = vadd.f32 %v1982, %v2142
        %v2144 = vpop.f32.mrb[0].mxu0
        %2145 = vmatprep.mubr.bf16.mxu0 %v997
        %2146 = vmatmul.mubr.bf16.gmra.mrb[0].mxu0 %v996
        %v2147 = vpop.f32.mrb[0].mxu0
        %v2148 = vadd.f32 %v1987, %v2147
        %v2149 = vpop.f32.mrb[0].mxu0
        %v2150 = vpop.f32.mrb[0].mxu0
        %v2151 = vadd.f32 %v1990, %v2150
        %v2152 = vpop.f32.mrb[0].mxu0
        %2153 = vmatprep.mubr.bf16.mxu0 %v1005
        %2154 = vmatmul.mubr.bf16.gmra.mrb[0].mxu0 %v1004
        %v2155 = vpop.f32.mrb[0].mxu0
        %v2156 = vadd.f32 %v1995, %v2155
        %v2157 = vpop.f32.mrb[0].mxu0
        %v2158 = vpop.f32.mrb[0].mxu0
        %v2159 = vadd.f32 %v1998, %v2158
        %v2160 = vpop.f32.mrb[0].mxu0
        %2161 = vmatprep.mubr.bf16.mxu0 %v1013
        %2162 = vmatmul.mubr.bf16.gmra.mrb[0].mxu0 %v1012
        %v2163 = vpop.f32.mrb[0].mxu0
        %v2164 = vadd.f32 %v2003, %v2163
        %v2165 = vpop.f32.mrb[0].mxu0
        %v2166 = vpop.f32.mrb[0].mxu0
        %v2167 = vadd.f32 %v2006, %v2166
        %v2168 = vpop.f32.mrb[0].mxu0
        %2169 = vmatprep.mubr.bf16.mxu0 %v1021
        %2170 = vmatmul.mubr.bf16.gmra.mrb[0].mxu0 %v1020
        %v2171 = vpop.f32.mrb[0].mxu0
        %v2172 = vadd.f32 %v2011, %v2171
        %v2173 = vpop.f32.mrb[0].mxu0
        %v2174 = vpop.f32.mrb[0].mxu0
        %v2175 = vadd.f32 %v2014, %v2174
        %v2176 = vpop.f32.mrb[0].mxu0
        %2177 = vmatprep.mubr.bf16.mxu0 %v1029
        %2178 = vmatmul.mubr.bf16.gmra.mrb[0].mxu0 %v1028
        %v2179 = vpop.f32.mrb[0].mxu0
        %v2180 = vadd.f32 %v2019, %v2179
        %v2181 = vpop.f32.mrb[0].mxu0
        %v2182 = vpop.f32.mrb[0].mxu0
        %v2183 = vadd.f32 %v2022, %v2182
        %v2184 = vpop.f32.mrb[0].mxu0
        %2185 = vmatprep.mubr.bf16.mxu0 %v1037
        %2186 = vmatmul.mubr.bf16.gmra.mrb[0].mxu0 %v1036
        %v2187 = vpop.f32.mrb[0].mxu0
        %v2188 = vadd.f32 %v2027, %v2187
        %v2189 = vpop.f32.mrb[0].mxu0
        %v2190 = vpop.f32.mrb[0].mxu0
        %v2191 = vadd.f32 %v2030, %v2190
        %v2192 = vpop.f32.mrb[0].mxu0
        %2193 = vmatprep.mubr.bf16.mxu0 %v1045
        %2194 = vmatmul.mubr.bf16.gmra.mrb[0].mxu0 %v1044
        %v2195 = vpop.f32.mrb[0].mxu0
        %v2196 = vadd.f32 %v2035, %v2195
        %v2197 = vpop.f32.mrb[0].mxu0
        %v2198 = vpop.f32.mrb[0].mxu0
        %v2199 = vadd.f32 %v2038, %v2198
        %v2200 = vpop.f32.mrb[0].mxu0
        %2201 = vmatprep.mubr.bf16.mxu0 %v1053
        %2202 = vmatmul.mubr.bf16.gmra.mrb[0].mxu0 %v1052
        %v2203 = vpop.f32.mrb[0].mxu0
        %v2204 = vadd.f32 %v2043, %v2203
        %v2205 = vpop.f32.mrb[0].mxu0
        %v2206 = vpop.f32.mrb[0].mxu0
        %v2207 = vadd.f32 %v2046, %v2206
        %v2208 = vpop.f32.mrb[0].mxu0
        %2209 = vmatprep.mubr.bf16.mxu0 %v1061
        %2210 = vmatmul.mubr.bf16.gmra.mrb[0].mxu0 %v1060
        %v2211 = vpop.f32.mrb[0].mxu0
        %v2212 = vadd.f32 %v2051, %v2211
        %v2213 = vpop.f32.mrb[0].mxu0
        %v2214 = vpop.f32.mrb[0].mxu0
        %v2215 = vadd.f32 %v2054, %v2214
        %v2216 = vpop.f32.mrb[0].mxu0
        %2217 = vmatprep.mubr.bf16.mxu0 %v1069
        %2218 = vmatmul.mubr.bf16.gmra.mrb[0].mxu0 %v1068
        %v2219 = vpop.f32.mrb[0].mxu0
        %v2220 = vadd.f32 %v2059, %v2219
        %v2221 = vpop.f32.mrb[0].mxu0
        %v2222 = vpop.f32.mrb[0].mxu0
        %v2223 = vadd.f32 %v2062, %v2222
        %v2224 = vpop.f32.mrb[0].mxu0
        %2225 = vmatprep.mubr.bf16.mxu0 %v1077
        %2226 = vmatmul.mubr.bf16.gmra.mrb[0].mxu0 %v1076
        %v2227 = vpop.f32.mrb[0].mxu0
        %v2228 = vadd.f32 %v2067, %v2227
        %v2229 = vpop.f32.mrb[0].mxu0
        %v2230 = vpop.f32.mrb[0].mxu0
        %v2231 = vadd.f32 %v2070, %v2230
        %v2232 = vpop.f32.mrb[0].mxu0
        %2233 = vdwg.mxu0
        %v2234 = vadd.f32 %v278, %v2108
        %v2235 = vadd.f32 %v279, %v2111
        %v2236 = vadd.f32 %v280, %v2116
        %v2237 = vadd.f32 %v281, %v2119
        %v2238 = vadd.f32 %v282, %v2124
        %v2239 = vadd.f32 %v283, %v2127
        %v2240 = vadd.f32 %v284, %v2132
        %v2241 = vadd.f32 %v285, %v2135
        %v2242 = vadd.f32 %v286, %v2140
        %v2243 = vadd.f32 %v287, %v2143
        %v2244 = vadd.f32 %v288, %v2148
        %v2245 = vadd.f32 %v289, %v2151
        %v2246 = vadd.f32 %v290, %v2156
        %v2247 = vadd.f32 %v291, %v2159
        %v2248 = vadd.f32 %v292, %v2164
        %v2249 = vadd.f32 %v293, %v2167
        %v2250 = vadd.f32 %v294, %v2172
        %v2251 = vadd.f32 %v295, %v2175
        %v2252 = vadd.f32 %v296, %v2180
        %v2253 = vadd.f32 %v297, %v2183
        %v2254 = vadd.f32 %v298, %v2188
        %v2255 = vadd.f32 %v299, %v2191
        %v2256 = vadd.f32 %v300, %v2196
        %v2257 = vadd.f32 %v301, %v2199
        %v2258 = vadd.f32 %v302, %v2204
        %v2259 = vadd.f32 %v303, %v2207
        %v2260 = vadd.f32 %v304, %v2212
        %v2261 = vadd.f32 %v305, %v2215
        %v2262 = vadd.f32 %v306, %v2220
        %v2263 = vadd.f32 %v307, %v2223
        %v2264 = vadd.f32 %v308, %v2228
        %v2265 = vadd.f32 %v309, %v2231
        %vm2266 = vcmask 130048
        %2267 = vst.msk [vmem:[%s231] sm:$0xff] %vm2266, %v2234
        %2268 = vst.msk [vmem:[%s231 + $0x8] sm:$0xff] %vm2266, %v2235
        %2269 = vst.msk [vmem:[%s231 + $0x10] sm:$0xff] %vm2266, %v2236
        %2270 = vst.msk [vmem:[%s231 + $0x18] sm:$0xff] %vm2266, %v2237
        %2271 = vst.msk [vmem:[%s231 + $0x20] sm:$0xff] %vm2266, %v2238
        %2272 = vst.msk [vmem:[%s231 + $0x28] sm:$0xff] %vm2266, %v2239
        %2273 = vst.msk [vmem:[%s231 + $0x30] sm:$0xff] %vm2266, %v2240
        %2274 = vst.msk [vmem:[%s231 + $0x38] sm:$0xff] %vm2266, %v2241
        %2275 = vst.msk [vmem:[%s231 + $0x40] sm:$0xff] %vm2266, %v2242
        %2276 = vst.msk [vmem:[%s231 + $0x48] sm:$0xff] %vm2266, %v2243
        %2277 = vst.msk [vmem:[%s231 + $0x50] sm:$0xff] %vm2266, %v2244
        %2278 = vst.msk [vmem:[%s231 + $0x58] sm:$0xff] %vm2266, %v2245
        %2279 = vst.msk [vmem:[%s231 + $0x60] sm:$0xff] %vm2266, %v2246
        %2280 = vst.msk [vmem:[%s231 + $0x68] sm:$0xff] %vm2266, %v2247
        %2281 = vst.msk [vmem:[%s231 + $0x70] sm:$0xff] %vm2266, %v2248
        %2282 = vst.msk [vmem:[%s231 + $0x78] sm:$0xff] %vm2266, %v2249
        %2283 = vst.msk [vmem:[%s231 + $0x80] sm:$0xff] %vm2266, %v2250
        %2284 = vst.msk [vmem:[%s231 + $0x88] sm:$0xff] %vm2266, %v2251
        %2285 = vst.msk [vmem:[%s231 + $0x90] sm:$0xff] %vm2266, %v2252
        %2286 = vst.msk [vmem:[%s231 + $0x98] sm:$0xff] %vm2266, %v2253
        %2287 = vst.msk [vmem:[%s231 + $0xa0] sm:$0xff] %vm2266, %v2254
        %2288 = vst.msk [vmem:[%s231 + $0xa8] sm:$0xff] %vm2266, %v2255
        %2289 = vst.msk [vmem:[%s231 + $0xb0] sm:$0xff] %vm2266, %v2256
        %2290 = vst.msk [vmem:[%s231 + $0xb8] sm:$0xff] %vm2266, %v2257
        %2291 = vst.msk [vmem:[%s231 + $0xc0] sm:$0xff] %vm2266, %v2258
        %2292 = vst.msk [vmem:[%s231 + $0xc8] sm:$0xff] %vm2266, %v2259
        %2293 = vst.msk [vmem:[%s231 + $0xd0] sm:$0xff] %vm2266, %v2260
        %2294 = vst.msk [vmem:[%s231 + $0xd8] sm:$0xff] %vm2266, %v2261
        %2295 = vst.msk [vmem:[%s231 + $0xe0] sm:$0xff] %vm2266, %v2262
        %2296 = vst.msk [vmem:[%s231 + $0xe8] sm:$0xff] %vm2266, %v2263
        %2297 = vst.msk [vmem:[%s231 + $0xf0] sm:$0xff] %vm2266, %v2264
        %2298 = vst.msk [vmem:[%s231 + $0xf8] sm:$0xff] %vm2266, %v2265
        // Predicated region
        $region41: #{tpu_custom_call.1} parent=31 // pred_check
          %p2299 = pneg %p234
        $region42: #{tpu_custom_call.1} parent=31 // pred_check_branch
          %2301 = sbr.rel (%p2299) target = $region44
        $region43: #{tpu_custom_call.1} parent=31 // pred_region
          %v2302 = vld [vmem:[%s231] sm:$0xff]
          %v2303 = vld [vmem:[%s231 + $0x8] sm:$0xff]
          %v2304 = vld [vmem:[%s231 + $0x10] sm:$0xff]
          %v2305 = vld [vmem:[%s231 + $0x18] sm:$0xff]
          %v2306 = vld [vmem:[%s231 + $0x20] sm:$0xff]
          %v2307 = vld [vmem:[%s231 + $0x28] sm:$0xff]
          %v2308 = vld [vmem:[%s231 + $0x30] sm:$0xff]
          %v2309 = vld [vmem:[%s231 + $0x38] sm:$0xff]
          %v2310 = vld [vmem:[%s231 + $0x40] sm:$0xff]
          %v2311 = vld [vmem:[%s231 + $0x48] sm:$0xff]
          %v2312 = vld [vmem:[%s231 + $0x50] sm:$0xff]
          %v2313 = vld [vmem:[%s231 + $0x58] sm:$0xff]
          %v2314 = vld [vmem:[%s231 + $0x60] sm:$0xff]
          %v2315 = vld [vmem:[%s231 + $0x68] sm:$0xff]
          %v2316 = vld [vmem:[%s231 + $0x70] sm:$0xff]
          %v2317 = vld [vmem:[%s231 + $0x78] sm:$0xff]
          %v2318 = vld [vmem:[%s231 + $0x80] sm:$0xff]
          %v2319 = vld [vmem:[%s231 + $0x88] sm:$0xff]
          %v2320 = vld [vmem:[%s231 + $0x90] sm:$0xff]
          %v2321 = vld [vmem:[%s231 + $0x98] sm:$0xff]
          %v2322 = vld [vmem:[%s231 + $0xa0] sm:$0xff]
          %v2323 = vld [vmem:[%s231 + $0xa8] sm:$0xff]
          %v2324 = vld [vmem:[%s231 + $0xb0] sm:$0xff]
          %v2325 = vld [vmem:[%s231 + $0xb8] sm:$0xff]
          %v2326 = vld [vmem:[%s231 + $0xc0] sm:$0xff]
          %v2327 = vld [vmem:[%s231 + $0xc8] sm:$0xff]
          %v2328 = vld [vmem:[%s231 + $0xd0] sm:$0xff]
          %v2329 = vld [vmem:[%s231 + $0xd8] sm:$0xff]
          %v2330 = vld [vmem:[%s231 + $0xe0] sm:$0xff]
          %v2331 = vld [vmem:[%s231 + $0xe8] sm:$0xff]
          %v2332 = vld [vmem:[%s231 + $0xf0] sm:$0xff]
          %v2333 = vld [vmem:[%s231 + $0xf8] sm:$0xff]
          %v2334 = vsel %vm2266, %v2302, -inf
          %2335 = vmax.xlane.f32.xlu0 %v2334
          %v2336 = vpop.xlane.xlu0 %2335
          %v2337 = vsel %vm2266, %v2303, -inf
          %2338 = vmax.xlane.f32.xlu0 %v2337
          %v2339 = vpop.xlane.xlu0 %2338
          %v2340 = vsel %vm2266, %v2304, -inf
          %2341 = vmax.xlane.f32.xlu0 %v2340
          %v2342 = vpop.xlane.xlu0 %2341
          %v2343 = vsel %vm2266, %v2305, -inf
          %2344 = vmax.xlane.f32.xlu0 %v2343
          %v2345 = vpop.xlane.xlu0 %2344
          %v2346 = vsel %vm2266, %v2306, -inf
          %2347 = vmax.xlane.f32.xlu0 %v2346
          %v2348 = vpop.xlane.xlu0 %2347
          %v2349 = vsel %vm2266, %v2307, -inf
          %2350 = vmax.xlane.f32.xlu0 %v2349
          %v2351 = vpop.xlane.xlu0 %2350
          %v2352 = vsel %vm2266, %v2308, -inf
          %2353 = vmax.xlane.f32.xlu0 %v2352
          %v2354 = vpop.xlane.xlu0 %2353
          %v2355 = vsel %vm2266, %v2309, -inf
          %2356 = vmax.xlane.f32.xlu0 %v2355
          %v2357 = vpop.xlane.xlu0 %2356
          %v2358 = vsel %vm2266, %v2310, -inf
          %2359 = vmax.xlane.f32.xlu0 %v2358
          %v2360 = vpop.xlane.xlu0 %2359
          %v2361 = vsel %vm2266, %v2311, -inf
          %2362 = vmax.xlane.f32.xlu0 %v2361
          %v2363 = vpop.xlane.xlu0 %2362
          %v2364 = vsel %vm2266, %v2312, -inf
          %2365 = vmax.xlane.f32.xlu0 %v2364
          %v2366 = vpop.xlane.xlu0 %2365
          %v2367 = vsel %vm2266, %v2313, -inf
          %2368 = vmax.xlane.f32.xlu0 %v2367
          %v2369 = vpop.xlane.xlu0 %2368
          %v2370 = vsel %vm2266, %v2314, -inf
          %2371 = vmax.xlane.f32.xlu0 %v2370
          %v2372 = vpop.xlane.xlu0 %2371
          %v2373 = vsel %vm2266, %v2315, -inf
          %2374 = vmax.xlane.f32.xlu0 %v2373
          %v2375 = vpop.xlane.xlu0 %2374
          %v2376 = vsel %vm2266, %v2316, -inf
          %2377 = vmax.xlane.f32.xlu0 %v2376
          %v2378 = vpop.xlane.xlu0 %2377
          %v2379 = vsel %vm2266, %v2317, -inf
          %2380 = vmax.xlane.f32.xlu0 %v2379
          %v2381 = vpop.xlane.xlu0 %2380
          %v2382 = vsel %vm2266, %v2318, -inf
          %2383 = vmax.xlane.f32.xlu0 %v2382
          %v2384 = vpop.xlane.xlu0 %2383
          %v2385 = vsel %vm2266, %v2319, -inf
          %2386 = vmax.xlane.f32.xlu0 %v2385
          %v2387 = vpop.xlane.xlu0 %2386
          %v2388 = vsel %vm2266, %v2320, -inf
          %2389 = vmax.xlane.f32.xlu0 %v2388
          %v2390 = vpop.xlane.xlu0 %2389
          %v2391 = vsel %vm2266, %v2321, -inf
          %2392 = vmax.xlane.f32.xlu0 %v2391
          %v2393 = vpop.xlane.xlu0 %2392
          %v2394 = vsel %vm2266, %v2322, -inf
          %2395 = vmax.xlane.f32.xlu0 %v2394
          %v2396 = vpop.xlane.xlu0 %2395
          %v2397 = vsel %vm2266, %v2323, -inf
          %2398 = vmax.xlane.f32.xlu0 %v2397
          %v2399 = vpop.xlane.xlu0 %2398
          %v2400 = vsel %vm2266, %v2324, -inf
          %2401 = vmax.xlane.f32.xlu0 %v2400
          %v2402 = vpop.xlane.xlu0 %2401
          %v2403 = vsel %vm2266, %v2325, -inf
          %2404 = vmax.xlane.f32.xlu0 %v2403
          %v2405 = vpop.xlane.xlu0 %2404
          %v2406 = vsel %vm2266, %v2326, -inf
          %2407 = vmax.xlane.f32.xlu0 %v2406
          %v2408 = vpop.xlane.xlu0 %2407
          %v2409 = vsel %vm2266, %v2327, -inf
          %2410 = vmax.xlane.f32.xlu0 %v2409
          %v2411 = vpop.xlane.xlu0 %2410
          %v2412 = vsel %vm2266, %v2328, -inf
          %2413 = vmax.xlane.f32.xlu0 %v2412
          %v2414 = vpop.xlane.xlu0 %2413
          %v2415 = vsel %vm2266, %v2329, -inf
          %2416 = vmax.xlane.f32.xlu0 %v2415
          %v2417 = vpop.xlane.xlu0 %2416
          %v2418 = vsel %vm2266, %v2330, -inf
          %2419 = vmax.xlane.f32.xlu0 %v2418
          %v2420 = vpop.xlane.xlu0 %2419
          %v2421 = vsel %vm2266, %v2331, -inf
          %2422 = vmax.xlane.f32.xlu0 %v2421
          %v2423 = vpop.xlane.xlu0 %2422
          %v2424 = vsel %vm2266, %v2332, -inf
          %2425 = vmax.xlane.f32.xlu0 %v2424
          %v2426 = vpop.xlane.xlu0 %2425
          %v2427 = vsel %vm2266, %v2333, -inf
          %2428 = vmax.xlane.f32.xlu0 %v2427
          %v2429 = vpop.xlane.xlu0 %2428
          %v2430 = vsub.f32 %v2302, %v2336
          %v2431 = vsub.f32 %v2303, %v2339
          %v2432 = vsub.f32 %v2304, %v2342
          %v2433 = vsub.f32 %v2305, %v2345
          %v2434 = vsub.f32 %v2306, %v2348
          %v2435 = vsub.f32 %v2307, %v2351
          %v2436 = vsub.f32 %v2308, %v2354
          %v2437 = vsub.f32 %v2309, %v2357
          %v2438 = vsub.f32 %v2310, %v2360
          %v2439 = vsub.f32 %v2311, %v2363
          %v2440 = vsub.f32 %v2312, %v2366
          %v2441 = vsub.f32 %v2313, %v2369
          %v2442 = vsub.f32 %v2314, %v2372
          %v2443 = vsub.f32 %v2315, %v2375
          %v2444 = vsub.f32 %v2316, %v2378
          %v2445 = vsub.f32 %v2317, %v2381
          %v2446 = vsub.f32 %v2318, %v2384
          %v2447 = vsub.f32 %v2319, %v2387
          %v2448 = vsub.f32 %v2320, %v2390
          %v2449 = vsub.f32 %v2321, %v2393
          %v2450 = vsub.f32 %v2322, %v2396
          %v2451 = vsub.f32 %v2323, %v2399
          %v2452 = vsub.f32 %v2324, %v2402
          %v2453 = vsub.f32 %v2325, %v2405
          %v2454 = vsub.f32 %v2326, %v2408
          %v2455 = vsub.f32 %v2327, %v2411
          %v2456 = vsub.f32 %v2328, %v2414
          %v2457 = vsub.f32 %v2329, %v2417
          %v2458 = vsub.f32 %v2330, %v2420
          %v2459 = vsub.f32 %v2331, %v2423
          %v2460 = vsub.f32 %v2332, %v2426
          %v2461 = vsub.f32 %v2333, %v2429
          %v2462 = vmul.f32 %v2430, 1.442695
          %v2463 = vpow.pop %v2462
          %v2464 = vmul.f32 %v2431, 1.442695
          %v2465 = vpow.pop %v2464
          %v2466 = vmul.f32 %v2432, 1.442695
          %v2467 = vpow.pop %v2466
          %v2468 = vmul.f32 %v2433, 1.442695
          %v2469 = vpow.pop %v2468
          %v2470 = vmul.f32 %v2434, 1.442695
          %v2471 = vpow.pop %v2470
          %v2472 = vmul.f32 %v2435, 1.442695
          %v2473 = vpow.pop %v2472
          %v2474 = vmul.f32 %v2436, 1.442695
          %v2475 = vpow.pop %v2474
          %v2476 = vmul.f32 %v2437, 1.442695
          %v2477 = vpow.pop %v2476
          %v2478 = vmul.f32 %v2438, 1.442695
          %v2479 = vpow.pop %v2478
          %v2480 = vmul.f32 %v2439, 1.442695
          %v2481 = vpow.pop %v2480
          %v2482 = vmul.f32 %v2440, 1.442695
          %v2483 = vpow.pop %v2482
          %v2484 = vmul.f32 %v2441, 1.442695
          %v2485 = vpow.pop %v2484
          %v2486 = vmul.f32 %v2442, 1.442695
          %v2487 = vpow.pop %v2486
          %v2488 = vmul.f32 %v2443, 1.442695
          %v2489 = vpow.pop %v2488
          %v2490 = vmul.f32 %v2444, 1.442695
          %v2491 = vpow.pop %v2490
          %v2492 = vmul.f32 %v2445, 1.442695
          %v2493 = vpow.pop %v2492
          %v2494 = vmul.f32 %v2446, 1.442695
          %v2495 = vpow.pop %v2494
          %v2496 = vmul.f32 %v2447, 1.442695
          %v2497 = vpow.pop %v2496
          %v2498 = vmul.f32 %v2448, 1.442695
          %v2499 = vpow.pop %v2498
          %v2500 = vmul.f32 %v2449, 1.442695
          %v2501 = vpow.pop %v2500
          %v2502 = vmul.f32 %v2450, 1.442695
          %v2503 = vpow.pop %v2502
          %v2504 = vmul.f32 %v2451, 1.442695
          %v2505 = vpow.pop %v2504
          %v2506 = vmul.f32 %v2452, 1.442695
          %v2507 = vpow.pop %v2506
          %v2508 = vmul.f32 %v2453, 1.442695
          %v2509 = vpow.pop %v2508
          %v2510 = vmul.f32 %v2454, 1.442695
          %v2511 = vpow.pop %v2510
          %v2512 = vmul.f32 %v2455, 1.442695
          %v2513 = vpow.pop %v2512
          %v2514 = vmul.f32 %v2456, 1.442695
          %v2515 = vpow.pop %v2514
          %v2516 = vmul.f32 %v2457, 1.442695
          %v2517 = vpow.pop %v2516
          %v2518 = vmul.f32 %v2458, 1.442695
          %v2519 = vpow.pop %v2518
          %v2520 = vmul.f32 %v2459, 1.442695
          %v2521 = vpow.pop %v2520
          %v2522 = vmul.f32 %v2460, 1.442695
          %v2523 = vpow.pop %v2522
          %v2524 = vmul.f32 %v2461, 1.442695
          %v2525 = vpow.pop %v2524
          %v2526 = vsel %vm2266, %v2463, 0.0
          %2527 = vadd.xlane.f32.xlu0 %v2526
          %v2528 = vpop.xlane.xlu0 %2527
          %v2529 = vsel %vm2266, %v2465, 0.0
          %2530 = vadd.xlane.f32.xlu0 %v2529
          %v2531 = vpop.xlane.xlu0 %2530
          %v2532 = vsel %vm2266, %v2467, 0.0
          %2533 = vadd.xlane.f32.xlu0 %v2532
          %v2534 = vpop.xlane.xlu0 %2533
          %v2535 = vsel %vm2266, %v2469, 0.0
          %2536 = vadd.xlane.f32.xlu0 %v2535
          %v2537 = vpop.xlane.xlu0 %2536
          %v2538 = vsel %vm2266, %v2471, 0.0
          %2539 = vadd.xlane.f32.xlu0 %v2538
          %v2540 = vpop.xlane.xlu0 %2539
          %v2541 = vsel %vm2266, %v2473, 0.0
          %2542 = vadd.xlane.f32.xlu0 %v2541
          %v2543 = vpop.xlane.xlu0 %2542
          %v2544 = vsel %vm2266, %v2475, 0.0
          %2545 = vadd.xlane.f32.xlu0 %v2544
          %v2546 = vpop.xlane.xlu0 %2545
          %v2547 = vsel %vm2266, %v2477, 0.0
          %2548 = vadd.xlane.f32.xlu0 %v2547
          %v2549 = vpop.xlane.xlu0 %2548
          %v2550 = vsel %vm2266, %v2479, 0.0
          %2551 = vadd.xlane.f32.xlu0 %v2550
          %v2552 = vpop.xlane.xlu0 %2551
          %v2553 = vsel %vm2266, %v2481, 0.0
          %2554 = vadd.xlane.f32.xlu0 %v2553
          %v2555 = vpop.xlane.xlu0 %2554
          %v2556 = vsel %vm2266, %v2483, 0.0
          %2557 = vadd.xlane.f32.xlu0 %v2556
          %v2558 = vpop.xlane.xlu0 %2557
          %v2559 = vsel %vm2266, %v2485, 0.0
          %2560 = vadd.xlane.f32.xlu0 %v2559
          %v2561 = vpop.xlane.xlu0 %2560
          %v2562 = vsel %vm2266, %v2487, 0.0
          %2563 = vadd.xlane.f32.xlu0 %v2562
          %v2564 = vpop.xlane.xlu0 %2563
          %v2565 = vsel %vm2266, %v2489, 0.0
          %2566 = vadd.xlane.f32.xlu0 %v2565
          %v2567 = vpop.xlane.xlu0 %2566
          %v2568 = vsel %vm2266, %v2491, 0.0
          %2569 = vadd.xlane.f32.xlu0 %v2568
          %v2570 = vpop.xlane.xlu0 %2569
          %v2571 = vsel %vm2266, %v2493, 0.0
          %2572 = vadd.xlane.f32.xlu0 %v2571
          %v2573 = vpop.xlane.xlu0 %2572
          %v2574 = vsel %vm2266, %v2495, 0.0
          %2575 = vadd.xlane.f32.xlu0 %v2574
          %v2576 = vpop.xlane.xlu0 %2575
          %v2577 = vsel %vm2266, %v2497, 0.0
          %2578 = vadd.xlane.f32.xlu0 %v2577
          %v2579 = vpop.xlane.xlu0 %2578
          %v2580 = vsel %vm2266, %v2499, 0.0
          %2581 = vadd.xlane.f32.xlu0 %v2580
          %v2582 = vpop.xlane.xlu0 %2581
          %v2583 = vsel %vm2266, %v2501, 0.0
          %2584 = vadd.xlane.f32.xlu0 %v2583
          %v2585 = vpop.xlane.xlu0 %2584
          %v2586 = vsel %vm2266, %v2503, 0.0
          %2587 = vadd.xlane.f32.xlu0 %v2586
          %v2588 = vpop.xlane.xlu0 %2587
          %v2589 = vsel %vm2266, %v2505, 0.0
          %2590 = vadd.xlane.f32.xlu0 %v2589
          %v2591 = vpop.xlane.xlu0 %2590
          %v2592 = vsel %vm2266, %v2507, 0.0
          %2593 = vadd.xlane.f32.xlu0 %v2592
          %v2594 = vpop.xlane.xlu0 %2593
          %v2595 = vsel %vm2266, %v2509, 0.0
          %2596 = vadd.xlane.f32.xlu0 %v2595
          %v2597 = vpop.xlane.xlu0 %2596
          %v2598 = vsel %vm2266, %v2511, 0.0
          %2599 = vadd.xlane.f32.xlu0 %v2598
          %v2600 = vpop.xlane.xlu0 %2599
          %v2601 = vsel %vm2266, %v2513, 0.0
          %2602 = vadd.xlane.f32.xlu0 %v2601
          %v2603 = vpop.xlane.xlu0 %2602
          %v2604 = vsel %vm2266, %v2515, 0.0
          %2605 = vadd.xlane.f32.xlu0 %v2604
          %v2606 = vpop.xlane.xlu0 %2605
          %v2607 = vsel %vm2266, %v2517, 0.0
          %2608 = vadd.xlane.f32.xlu0 %v2607
          %v2609 = vpop.xlane.xlu0 %2608
          %v2610 = vsel %vm2266, %v2519, 0.0
          %2611 = vadd.xlane.f32.xlu0 %v2610
          %v2612 = vpop.xlane.xlu0 %2611
          %v2613 = vsel %vm2266, %v2521, 0.0
          %2614 = vadd.xlane.f32.xlu0 %v2613
          %v2615 = vpop.xlane.xlu0 %2614
          %v2616 = vsel %vm2266, %v2523, 0.0
          %2617 = vadd.xlane.f32.xlu0 %v2616
          %v2618 = vpop.xlane.xlu0 %2617
          %v2619 = vsel %vm2266, %v2525, 0.0
          %2620 = vadd.xlane.f32.xlu0 %v2619
          %v2621 = vpop.xlane.xlu0 %2620
          %v2622 = vrcp.pop %v2528
          %v2623 = vmul.f32 %v2463, %v2622
          %v2624 = vrcp.pop %v2531
          %v2625 = vmul.f32 %v2465, %v2624
          %v2626 = vrcp.pop %v2534
          %v2627 = vmul.f32 %v2467, %v2626
          %v2628 = vrcp.pop %v2537
          %v2629 = vmul.f32 %v2469, %v2628
          %v2630 = vrcp.pop %v2540
          %v2631 = vmul.f32 %v2471, %v2630
          %v2632 = vrcp.pop %v2543
          %v2633 = vmul.f32 %v2473, %v2632
          %v2634 = vrcp.pop %v2546
          %v2635 = vmul.f32 %v2475, %v2634
          %v2636 = vrcp.pop %v2549
          %v2637 = vmul.f32 %v2477, %v2636
          %v2638 = vrcp.pop %v2552
          %v2639 = vmul.f32 %v2479, %v2638
          %v2640 = vrcp.pop %v2555
          %v2641 = vmul.f32 %v2481, %v2640
          %v2642 = vrcp.pop %v2558
          %v2643 = vmul.f32 %v2483, %v2642
          %v2644 = vrcp.pop %v2561
          %v2645 = vmul.f32 %v2485, %v2644
          %v2646 = vrcp.pop %v2564
          %v2647 = vmul.f32 %v2487, %v2646
          %v2648 = vrcp.pop %v2567
          %v2649 = vmul.f32 %v2489, %v2648
          %v2650 = vrcp.pop %v2570
          %v2651 = vmul.f32 %v2491, %v2650
          %v2652 = vrcp.pop %v2573
          %v2653 = vmul.f32 %v2493, %v2652
          %v2654 = vrcp.pop %v2576
          %v2655 = vmul.f32 %v2495, %v2654
          %v2656 = vrcp.pop %v2579
          %v2657 = vmul.f32 %v2497, %v2656
          %v2658 = vrcp.pop %v2582
          %v2659 = vmul.f32 %v2499, %v2658
          %v2660 = vrcp.pop %v2585
          %v2661 = vmul.f32 %v2501, %v2660
          %v2662 = vrcp.pop %v2588
          %v2663 = vmul.f32 %v2503, %v2662
          %v2664 = vrcp.pop %v2591
          %v2665 = vmul.f32 %v2505, %v2664
          %v2666 = vrcp.pop %v2594
          %v2667 = vmul.f32 %v2507, %v2666
          %v2668 = vrcp.pop %v2597
          %v2669 = vmul.f32 %v2509, %v2668
          %v2670 = vrcp.pop %v2600
          %v2671 = vmul.f32 %v2511, %v2670
          %v2672 = vrcp.pop %v2603
          %v2673 = vmul.f32 %v2513, %v2672
          %v2674 = vrcp.pop %v2606
          %v2675 = vmul.f32 %v2515, %v2674
          %v2676 = vrcp.pop %v2609
          %v2677 = vmul.f32 %v2517, %v2676
          %v2678 = vrcp.pop %v2612
          %v2679 = vmul.f32 %v2519, %v2678
          %v2680 = vrcp.pop %v2615
          %v2681 = vmul.f32 %v2521, %v2680
          %v2682 = vrcp.pop %v2618
          %v2683 = vmul.f32 %v2523, %v2682
          %v2684 = vrcp.pop %v2621
          %v2685 = vmul.f32 %v2525, %v2684
          %2686 = vst.msk [vmem:[%s231] sm:$0xff] %vm2266, %v2623
          %2687 = vst.msk [vmem:[%s231 + $0x8] sm:$0xff] %vm2266, %v2625
          %2688 = vst.msk [vmem:[%s231 + $0x10] sm:$0xff] %vm2266, %v2627
          %2689 = vst.msk [vmem:[%s231 + $0x18] sm:$0xff] %vm2266, %v2629
          %2690 = vst.msk [vmem:[%s231 + $0x20] sm:$0xff] %vm2266, %v2631
          %2691 = vst.msk [vmem:[%s231 + $0x28] sm:$0xff] %vm2266, %v2633
          %2692 = vst.msk [vmem:[%s231 + $0x30] sm:$0xff] %vm2266, %v2635
          %2693 = vst.msk [vmem:[%s231 + $0x38] sm:$0xff] %vm2266, %v2637
          %2694 = vst.msk [vmem:[%s231 + $0x40] sm:$0xff] %vm2266, %v2639
          %2695 = vst.msk [vmem:[%s231 + $0x48] sm:$0xff] %vm2266, %v2641
          %2696 = vst.msk [vmem:[%s231 + $0x50] sm:$0xff] %vm2266, %v2643
          %2697 = vst.msk [vmem:[%s231 + $0x58] sm:$0xff] %vm2266, %v2645
          %2698 = vst.msk [vmem:[%s231 + $0x60] sm:$0xff] %vm2266, %v2647
          %2699 = vst.msk [vmem:[%s231 + $0x68] sm:$0xff] %vm2266, %v2649
          %2700 = vst.msk [vmem:[%s231 + $0x70] sm:$0xff] %vm2266, %v2651
          %2701 = vst.msk [vmem:[%s231 + $0x78] sm:$0xff] %vm2266, %v2653
          %2702 = vst.msk [vmem:[%s231 + $0x80] sm:$0xff] %vm2266, %v2655
          %2703 = vst.msk [vmem:[%s231 + $0x88] sm:$0xff] %vm2266, %v2657
          %2704 = vst.msk [vmem:[%s231 + $0x90] sm:$0xff] %vm2266, %v2659
          %2705 = vst.msk [vmem:[%s231 + $0x98] sm:$0xff] %vm2266, %v2661
          %2706 = vst.msk [vmem:[%s231 + $0xa0] sm:$0xff] %vm2266, %v2663
          %2707 = vst.msk [vmem:[%s231 + $0xa8] sm:$0xff] %vm2266, %v2665
          %2708 = vst.msk [vmem:[%s231 + $0xb0] sm:$0xff] %vm2266, %v2667
          %2709 = vst.msk [vmem:[%s231 + $0xb8] sm:$0xff] %vm2266, %v2669
          %2710 = vst.msk [vmem:[%s231 + $0xc0] sm:$0xff] %vm2266, %v2671
          %2711 = vst.msk [vmem:[%s231 + $0xc8] sm:$0xff] %vm2266, %v2673
          %2712 = vst.msk [vmem:[%s231 + $0xd0] sm:$0xff] %vm2266, %v2675
          %2713 = vst.msk [vmem:[%s231 + $0xd8] sm:$0xff] %vm2266, %v2677
          %2714 = vst.msk [vmem:[%s231 + $0xe0] sm:$0xff] %vm2266, %v2679
          %2715 = vst.msk [vmem:[%s231 + $0xe8] sm:$0xff] %vm2266, %v2681
          %2716 = vst.msk [vmem:[%s231 + $0xf0] sm:$0xff] %vm2266, %v2683
          %2717 = vst.msk [vmem:[%s231 + $0xf8] sm:$0xff] %vm2266, %v2685
        $region44: #{tpu_custom_call.1} parent=31 // pred_fallthru
          _
        %s2718 = smul.u32 32, %s21
        %p2719 = scmp.lt.s32.totalorder %s2718, 63
        %s2720 = scalar_select %p2719, %s2718, 63
        %s2721 = smul.addr %s2720, 8
        %s2722 = scalar_lea.vmem %s3, %s2721
        // Predicated region
        $region45: #{tpu_custom_call.1} parent=31 // pred_check
          %p2723 = pneg %p122
        $region46: #{tpu_custom_call.1} parent=31 // pred_check_branch
          %2725 = sbr.rel (%p2723) target = $region48
        $region47: #{tpu_custom_call.1} parent=31 // pred_region
          %s2726 = smul.u32 32, %s21
        $region48: #{tpu_custom_call.1} parent=31 // pred_fallthru
          _
      $region32: #{tpu_custom_call.1} parent=5 // pred_fallthru
        _
      %p2727 = scmp.le.s32.totalorder 2, %s12
      // Predicated region
      $region49: #{tpu_custom_call.1} parent=5 // pred_check
        %p2728 = pneg %p2727
      $region50: #{tpu_custom_call.1} parent=5 // pred_check_branch
        %2730 = sbr.rel (%p2728) target = $region52
      $region51: #{tpu_custom_call.1} parent=5 // pred_region
        %s2731 = ssub.s32 %s12, 2
        // Predicated region
        $region53: #{tpu_custom_call.1} parent=51 // pred_check
          %p2732 = pneg %p128
        $region54: #{tpu_custom_call.1} parent=51 // pred_check_branch
          %2734 = sbr.rel (%p2732) target = $region56
        $region55: #{tpu_custom_call.1} parent=51 // pred_region
          %s2735 = smul.u32 32, %s23
          %p2736 = scmp.lt.s32.totalorder %s2735, 63
          %s2737 = scalar_select %p2736, %s2735, 63
          %s2738 = smul.addr %s2737, 8
          %s2739 = scalar_lea.vmem %s3, %s2738
        $region56: #{tpu_custom_call.1} parent=51 // pred_fallthru
          _
      $region52: #{tpu_custom_call.1} parent=5 // pred_fallthru
        _
    $region6: #{tpu_custom_call.1} parent=1 // loop_footer
      %s16 = sadd.s32 1, %s12
    $region7: #{tpu_custom_call.1} parent=1 // loop_footer_branch
      %11 = sbr.rel target = $region3
    $region8: #{tpu_custom_call.1} parent=1 // loop_exit
      _
    %2740 = vsyncpa [#allocation3], 1
    %s2741 = scalar_lea.sflag [#allocation3], 1
    %2742 = vsyncpa %s2741, 1

</llo_original>
